<compile_context>
chip_gen: v7x
topology: tpu7x:2x2x1
jax: 0.10.0
libtpu: 0.0.40
codegen_flags: <defaults>
</compile_context>

<pallas_src>
import jax
import jax.numpy as jnp
from jax.experimental import pallas as pl
from jax.experimental.pallas import tpu as pltpu


# ----------------------------------------------------------------------------
# Kernel
# ----------------------------------------------------------------------------
def _make_rnn_kernel(n_layers: int, seq_len: int, batch: int, hidden_dim: int):
    """Fused multi-layer LSTM (wavefront) + FC + FC2 kernel; all VMEM-resident."""
    L, T, B, H = n_layers, seq_len, batch, hidden_dim

    def kernel(*refs):
        # ---- unpack refs (inputs then outputs) --------------------------------
        x_ref, h0_ref, c0_ref = refs[0], refs[1], refs[2]
        idx = 3
        layer_refs = []
        for _ in range(L):
            layer_refs.append(tuple(refs[idx:idx + 3]))   # (w_ih, w_hh, b)
            idx += 3
        fc_w_ref, fc_b_ref, fc2_w_ref, fc2_b_ref = refs[idx:idx + 4]
        idx += 4
        out_ref, hn_ref, cn_ref = refs[idx:idx + 3]

        # Weights as values (reused every wave).
        w_ih = [layer_refs[l][0][...] for l in range(L)]   # (in_l, 4H) bf16
        w_hh = [layer_refs[l][1][...] for l in range(L)]   # (H, 4H)   bf16
        bias = [layer_refs[l][2][...] for l in range(L)]   # (1, 4H)   f32

        # Hoisted layer-0 input projection: single big matmul off the serial
        # chain, bias folded in once.  Row layout: row = t*B + b.
        x_proj0 = jnp.dot(x_ref[...], w_ih[0],
                          preferred_element_type=jnp.float32) + bias[0]   # (T*B,4H) f32

        h = [h0_ref[l] for l in range(L)]       # (B, H) f32 per layer
        c = [c0_ref[l] for l in range(L)]       # (B, H) f32 per layer
        prev_out = [None] * L                   # bf16 handoff layer l -> l+1 (next wave)

        def lstm_step(l, xp, h_l, c_l):
            # Serial chain of layer l: only the h @ w_hh matmul + gate math.
            gates = xp + jnp.dot(h_l.astype(jnp.bfloat16), w_hh[l],
                                 preferred_element_type=jnp.float32)      # (B,4H) f32
            # One EUP pass: f/i/o columns were pre-scaled by 0.5 in the wrapper,
            # so sigmoid(x) = 0.5*tanh(x/2) + 0.5 falls out of the same tanh.
            th = jnp.tanh(gates)
            # Gate layout after wrapper permutation: [f | i | g | o]
            f_g = th[:, 0:H] * 0.5 + 0.5        # lanes 0:H, aligned with c/h
            i_g = th[:, H:2 * H] * 0.5 + 0.5
            g_g = th[:, 2 * H:3 * H]
            o_g = th[:, 3 * H:4 * H] * 0.5 + 0.5
            c_n = f_g * c_l + i_g * g_g          # f32 cell update
            h_n = o_g * jnp.tanh(c_n)            # f32 hidden update
            return h_n, c_n

        # ---- wavefront over layers: wave w runs layer l's timestep (w - l) ----
        # Fully unrolled (T, L small & static).
        # TODO(synk): if T grows large, switch to lax.fori_loop(..., unroll=2..4)
        # over the wavefront body to bound code size.
        for w in range(T + L - 1):
            # High -> low layer order so prev_out[l-1] is read (wave w-1 value)
            # before layer l-1 overwrites it within the same wave.
            for l in range(L - 1, -1, -1):
                t = w - l
                if not (0 <= t < T):
                    continue
                if l == 0:
                    xp = x_proj0[t * B:(t + 1) * B, :]
                else:
                    # Per-wave input projection from layer l-1's fresh h_t:
                    # off layer l's serial chain, overlaps with its recurrence.
                    xp = jnp.dot(prev_out[l - 1], w_ih[l],
                                 preferred_element_type=jnp.float32) + bias[l]
                h[l], c[l] = lstm_step(l, xp, h[l], c[l])
                if l < L - 1:
                    prev_out[l] = h[l].astype(jnp.bfloat16)
            # TODO(synk): inter-layer LSTM dropout is a no-op at inference.

        for l in range(L):
            hn_ref[l] = h[l]
            cn_ref[l] = c[l]

        # ---- FC heads on the last timestep (== out[:, -1] in the PyTorch module)
        out1 = jnp.dot(h[L - 1], fc_w_ref[...],
                       preferred_element_type=jnp.float32) + fc_b_ref[...]
        out2 = jnp.dot(out1, fc2_w_ref[...],
                       preferred_element_type=jnp.float32) + fc2_b_ref[...]
        # Note: (B, O=4) is a masked partial store; pad O toward 128 if it grows.
        out_ref[...] = out2

    return kernel


# ----------------------------------------------------------------------------
# One-time parameter prep (hoisted out of the per-call wrapper)
# ----------------------------------------------------------------------------
def prepare_params(params):
    """Transpose / cast / fuse biases / permute gates / pre-scale sigmoid gates.

    Gate columns are permuted from PyTorch order (i, f, g, o) to (f, i, g, o)
    so the f-gate lands on lanes 0:H, and the sigmoid-gate (f, i, o) columns of
    both w_ih and w_hh (and the fused bias) are pre-scaled by 0.5 so a single
    tanh pass in the kernel yields every gate.  Exact: power-of-two scaling
    commutes with bf16 rounding.
    """
    L = len(params["w_ih"])
    H = params["fc_w"].shape[0]

    def perm_scale_cols(w):      # w: (in, 4H) in PyTorch gate order i,f,g,o
        i_w, f_w = w[:, 0:H], w[:, H:2 * H]
        g_w, o_w = w[:, 2 * H:3 * H], w[:, 3 * H:4 * H]
        return jnp.concatenate([0.5 * f_w, 0.5 * i_w, g_w, 0.5 * o_w], axis=1)

    def perm_scale_bias(b):      # b: (4H,)
        i_b, f_b = b[0:H], b[H:2 * H]
        g_b, o_b = b[2 * H:3 * H], b[3 * H:4 * H]
        return jnp.concatenate([0.5 * f_b, 0.5 * i_b, g_b, 0.5 * o_b], axis=0)

    layers = []
    for l in range(L):
        w_ih_t = jnp.transpose(params["w_ih"][l]).astype(jnp.float32)   # (in_l, 4H)
        w_hh_t = jnp.transpose(params["w_hh"][l]).astype(jnp.float32)   # (H, 4H)
        b_fused = (params["b_ih"][l] + params["b_hh"][l]).astype(jnp.float32)
        layers.append((
            perm_scale_cols(w_ih_t).astype(jnp.bfloat16),
            perm_scale_cols(w_hh_t).astype(jnp.bfloat16),
            perm_scale_bias(b_fused)[None, :],                           # (1, 4H) f32
        ))
    return {
        "layers": layers,
        "fc_w": jnp.transpose(params["fc_w"]).astype(jnp.float32),       # (H, H)
        "fc_b": params["fc_b"].astype(jnp.float32)[None, :],             # (1, H)
        "fc2_w": jnp.transpose(params["fc2_w"]).astype(jnp.float32),     # (H, O)
        "fc2_b": params["fc2_b"].astype(jnp.float32)[None, :],           # (1, O)
    }


def _device_vmem_cap_bytes():
    """Physical VMEM capacity (128 MiB v5e/v6e, 64 MiB v7x); safe fallback."""
    default = 64 * 1024 * 1024
    try:
        get_info = getattr(pltpu, "get_tpu_info", None)
        if get_info is None:
            return default
        cap = getattr(get_info(), "vmem_capacity_bytes", None)
        return int(cap) if cap else default
    except Exception:
        return default


# ----------------------------------------------------------------------------
# Wrapper
# ----------------------------------------------------------------------------
def rnn_forward(x, hidden, prepared):
    """x: (B, T, input_size); hidden: (h0, c0) each (L, B, H); prepared from prepare_params."""
    h0, c0 = hidden
    B, T, I = x.shape
    L, _, H = h0.shape
    O = prepared["fc2_w"].shape[1]

    # time-major, flattened to (T*B, I); row index = t*B + b. bf16 MXU operand.
    x_rows = jnp.transpose(x, (1, 0, 2)).reshape(T * B, I).astype(jnp.bfloat16)

    in_arrays = [x_rows, h0.astype(jnp.float32), c0.astype(jnp.float32)]
    for (w_ih, w_hh, b) in prepared["layers"]:
        in_arrays += [w_ih, w_hh, b]
    in_arrays += [prepared["fc_w"], prepared["fc_b"],
                  prepared["fc2_w"], prepared["fc2_b"]]

    vmem = pl.BlockSpec(memory_space=pltpu.MemorySpace.VMEM)

    # Size the scoped VMEM limit from the actual resident footprint (with
    # headroom), clamped below the device's physical VMEM (64 MiB on v7x).
    footprint = sum(int(a.size) * a.dtype.itemsize for a in in_arrays)
    footprint += (B * O + 2 * L * B * H) * 4                             # outputs
    phys = _device_vmem_cap_bytes()
    device_cap = min(96 * 1024 * 1024, (phys * 3) // 4)
    vmem_limit = int(min(device_cap, max(32 * 1024 * 1024, 4 * footprint)))

    # TODO(synk): on v7x with effective batch >= 16 rows, add a batch-tile grid
    # axis with dimension_semantics=("parallel",) to use the second TensorCore;
    # with B=2 (< one 8-sublane tile) it cannot be split, so no grid is used.
    # TODO(synk): for large H / many layers, pass weights with memory_space=pl.ANY
    # and double-buffer-prefetch layer l+1's weights via pltpu.make_async_copy
    # while layer l's recurrence runs (all-resident breaks first on v7x's 64 MiB).
    out, hn, cn = pl.pallas_call(
        _make_rnn_kernel(L, T, B, H),
        out_shape=(
            jax.ShapeDtypeStruct((B, O), jnp.float32),
            jax.ShapeDtypeStruct((L, B, H), jnp.float32),
            jax.ShapeDtypeStruct((L, B, H), jnp.float32),
        ),
        in_specs=[vmem] * len(in_arrays),
        out_specs=(vmem, vmem, vmem),
        compiler_params=pltpu.CompilerParams(vmem_limit_bytes=vmem_limit),
    )(*in_arrays)
    return out, (hn, cn)


# ----------------------------------------------------------------------------
# Pure-JAX references for sanity checks (PyTorch layout / standard sigmoid)
# ----------------------------------------------------------------------------
def rnn_forward_ref(x, hidden, params, matmul_dtype=jnp.float32):
    """Same math as the module; matmul operands cast to `matmul_dtype`."""
    h0, c0 = hidden
    B, T, I = x.shape
    L, _, H = h0.shape
    seq = x.astype(jnp.float32)
    hs, cs = [], []
    for l in range(L):
        w_ih = jnp.transpose(params["w_ih"][l]).astype(matmul_dtype)
        w_hh = jnp.transpose(params["w_hh"][l]).astype(matmul_dtype)
        b = (params["b_ih"][l] + params["b_hh"][l]).astype(jnp.float32)
        h, c = h0[l].astype(jnp.float32), c0[l].astype(jnp.float32)
        outs = []
        for t in range(T):
            xp = jnp.dot(seq[:, t].astype(matmul_dtype), w_ih,
                         preferred_element_type=jnp.float32) + b
            gates = xp + jnp.dot(h.astype(matmul_dtype), w_hh,
                                 preferred_element_type=jnp.float32)
            i_g = jax.nn.sigmoid(gates[:, 0:H])
            f_g = jax.nn.sigmoid(gates[:, H:2 * H])
            g_g = jnp.tanh(gates[:, 2 * H:3 * H])
            o_g = jax.nn.sigmoid(gates[:, 3 * H:4 * H])
            c = f_g * c + i_g * g_g
            h = o_g * jnp.tanh(c)
            outs.append(h)
        seq = jnp.stack(outs, axis=1)
        hs.append(h)
        cs.append(c)
    last = seq[:, -1]
    out = last @ jnp.transpose(params["fc_w"]) + params["fc_b"]
    out = out @ jnp.transpose(params["fc2_w"]) + params["fc2_b"]
    return out, (jnp.stack(hs), jnp.stack(cs))


# ----------------------------------------------------------------------------
# Main
# ----------------------------------------------------------------------------
if __name__ == "__main__":
    input_size, output_size, hidden_dim, n_layers = 16, 4, 32, 2
    B, T = 2, 8

    key = jax.random.PRNGKey(0)
    keys = jax.random.split(key, 16)

    def init(k, shape, scale=0.1):
        return (scale * jax.random.normal(k, shape)).astype(jnp.float32)

    params = {
        "w_ih": [init(keys[0], (4 * hidden_dim, input_size)),
                 init(keys[1], (4 * hidden_dim, hidden_dim))],
        "w_hh": [init(keys[2], (4 * hidden_dim, hidden_dim)),
                 init(keys[3], (4 * hidden_dim, hidden_dim))],
        "b_ih": [init(keys[4], (4 * hidden_dim,)),
                 init(keys[5], (4 * hidden_dim,))],
        "b_hh": [init(keys[6], (4 * hidden_dim,)),
                 init(keys[7], (4 * hidden_dim,))],
        "fc_w": init(keys[8], (hidden_dim, hidden_dim)),
        "fc_b": init(keys[9], (hidden_dim,)),
        "fc2_w": init(keys[10], (output_size, hidden_dim)),
        "fc2_b": init(keys[11], (output_size,)),
    }

    x = init(keys[12], (B, T, input_size), scale=1.0)
    h0 = jnp.zeros((n_layers, B, hidden_dim), jnp.float32)
    c0 = jnp.zeros((n_layers, B, hidden_dim), jnp.float32)

    # One-time parameter prep (layout / dtype / gate permutation / pre-scaling).
    prepared = jax.block_until_ready(prepare_params(params))

    out, (hn, cn) = rnn_forward(x, (h0, c0), prepared)
    jax.block_until_ready((out, hn, cn))

    assert out.shape == (B, output_size)
    assert hn.shape == (n_layers, B, hidden_dim)
    assert cn.shape == (n_layers, B, hidden_dim)

    # Strict check against a reference with matching matmul math (bf16 operands).
    # Slightly looser than before since the kernel derives sigmoids from the
    # single tanh pass (mathematically exact, EUP rounding differs slightly).
    out_b, (hn_b, cn_b) = rnn_forward_ref(x, (h0, c0), params,
                                          matmul_dtype=jnp.bfloat16)
    assert jnp.allclose(out, out_b, atol=1e-3), "output mismatch vs bf16-math ref"
    assert jnp.allclose(hn, hn_b, atol=1e-3), "h_n mismatch vs bf16-math ref"
    assert jnp.allclose(cn, cn_b, atol=1e-3), "c_n mismatch vs bf16-math ref"

    # Looser check against the full-f32 reference (PyTorch-equivalent math).
    out_f, (hn_f, cn_f) = rnn_forward_ref(x, (h0, c0), params,
                                          matmul_dtype=jnp.float32)
    assert jnp.allclose(out, out_f, atol=5e-2), "output mismatch vs f32 ref"
    assert jnp.allclose(hn, hn_f, atol=5e-2), "h_n mismatch vs f32 ref"
    assert jnp.allclose(cn, cn_f, atol=5e-2), "c_n mismatch vs f32 ref"

    print("KERNEL_OK")
</pallas_src>

<mosaic_0001>
module attributes {stable_mosaic.version = 11 : i64} {
  func.func @kernel(%arg0: memref<16x16xbf16, #tpu.memory_space<vmem>>, %arg1: memref<2x2x32xf32, #tpu.memory_space<vmem>>, %arg2: memref<2x2x32xf32, #tpu.memory_space<vmem>>, %arg3: memref<16x128xbf16, #tpu.memory_space<vmem>>, %arg4: memref<32x128xbf16, #tpu.memory_space<vmem>>, %arg5: memref<1x128xf32, #tpu.memory_space<vmem>>, %arg6: memref<32x128xbf16, #tpu.memory_space<vmem>>, %arg7: memref<32x128xbf16, #tpu.memory_space<vmem>>, %arg8: memref<1x128xf32, #tpu.memory_space<vmem>>, %arg9: memref<32x32xf32, #tpu.memory_space<vmem>>, %arg10: memref<1x32xf32, #tpu.memory_space<vmem>>, %arg11: memref<32x4xf32, #tpu.memory_space<vmem>>, %arg12: memref<1x4xf32, #tpu.memory_space<vmem>>, %arg13: memref<2x4xf32, #tpu.memory_space<vmem>>, %arg14: memref<2x2x32xf32, #tpu.memory_space<vmem>>, %arg15: memref<2x2x32xf32, #tpu.memory_space<vmem>>) attributes {dimension_semantics = [], scalar_prefetch = 0 : i64, scratch_operands = 0 : i64, tpu.core_type = #tpu.core_type<tc>} {
    %c0 = arith.constant 0 : index
    %c0_0 = arith.constant 0 : index
    %0 = vector.load %arg3[%c0, %c0_0] : memref<16x128xbf16, #tpu.memory_space<vmem>>, vector<16x128xbf16>
    %c0_1 = arith.constant 0 : index
    %c0_2 = arith.constant 0 : index
    %1 = vector.load %arg6[%c0_1, %c0_2] : memref<32x128xbf16, #tpu.memory_space<vmem>>, vector<32x128xbf16>
    %c0_3 = arith.constant 0 : index
    %c0_4 = arith.constant 0 : index
    %2 = vector.load %arg4[%c0_3, %c0_4] : memref<32x128xbf16, #tpu.memory_space<vmem>>, vector<32x128xbf16>
    %c0_5 = arith.constant 0 : index
    %c0_6 = arith.constant 0 : index
    %3 = vector.load %arg7[%c0_5, %c0_6] : memref<32x128xbf16, #tpu.memory_space<vmem>>, vector<32x128xbf16>
    %c0_7 = arith.constant 0 : index
    %c0_8 = arith.constant 0 : index
    %4 = vector.load %arg5[%c0_7, %c0_8] : memref<1x128xf32, #tpu.memory_space<vmem>>, vector<1x128xf32>
    %c0_9 = arith.constant 0 : index
    %c0_10 = arith.constant 0 : index
    %5 = vector.load %arg8[%c0_9, %c0_10] : memref<1x128xf32, #tpu.memory_space<vmem>>, vector<1x128xf32>
    %c0_11 = arith.constant 0 : index
    %c0_12 = arith.constant 0 : index
    %6 = vector.load %arg0[%c0_11, %c0_12] : memref<16x16xbf16, #tpu.memory_space<vmem>>, vector<16x16xbf16>
    %cst = arith.constant dense<0.000000e+00> : vector<16x128xf32>
    %7 = tpu.matmul %6, %0, %cst {dimension_numbers = #tpu.dot_dimension_numbers<[1], [0], [0], [1], [0, 0, 1, 1], [], []>} : vector<16x16xbf16>, vector<16x128xbf16>, vector<16x128xf32> -> vector<16x128xf32>
    %8 = vector.broadcast %4 : vector<1x128xf32> to vector<16x128xf32>
    %9 = arith.addf %7, %8 : vector<16x128xf32>
    %c0_13 = arith.constant 0 : index
    %c0_14 = arith.constant 0 : index
    %c0_15 = arith.constant 0 : index
    %10 = vector.load %arg1[%c0_13, %c0_14, %c0_15] : memref<2x2x32xf32, #tpu.memory_space<vmem>>, vector<1x2x32xf32>
    %11 = vector.shape_cast %10 : vector<1x2x32xf32> to vector<2x32xf32>
    %c1 = arith.constant 1 : index
    %c0_16 = arith.constant 0 : index
    %c0_17 = arith.constant 0 : index
    %12 = vector.load %arg1[%c1, %c0_16, %c0_17] : memref<2x2x32xf32, #tpu.memory_space<vmem>>, vector<1x2x32xf32>
    %13 = vector.shape_cast %12 : vector<1x2x32xf32> to vector<2x32xf32>
    %c0_18 = arith.constant 0 : index
    %c0_19 = arith.constant 0 : index
    %c0_20 = arith.constant 0 : index
    %14 = vector.load %arg2[%c0_18, %c0_19, %c0_20] : memref<2x2x32xf32, #tpu.memory_space<vmem>>, vector<1x2x32xf32>
    %15 = vector.shape_cast %14 : vector<1x2x32xf32> to vector<2x32xf32>
    %c1_21 = arith.constant 1 : index
    %c0_22 = arith.constant 0 : index
    %c0_23 = arith.constant 0 : index
    %16 = vector.load %arg2[%c1_21, %c0_22, %c0_23] : memref<2x2x32xf32, #tpu.memory_space<vmem>>, vector<1x2x32xf32>
    %17 = vector.shape_cast %16 : vector<1x2x32xf32> to vector<2x32xf32>
    %18 = vector.extract_strided_slice %9 {offsets = [0, 0], sizes = [2, 128], strides = [1, 1]} : vector<16x128xf32> to vector<2x128xf32>
    %19 = arith.truncf %11 : vector<2x32xf32> to vector<2x32xbf16>
    %cst_24 = arith.constant dense<0.000000e+00> : vector<2x128xf32>
    %20 = tpu.matmul %19, %2, %cst_24 {dimension_numbers = #tpu.dot_dimension_numbers<[1], [0], [0], [1], [0, 0, 1, 1], [], []>} : vector<2x32xbf16>, vector<32x128xbf16>, vector<2x128xf32> -> vector<2x128xf32>
    %21 = arith.addf %18, %20 : vector<2x128xf32>
    %22 = math.tanh %21 : vector<2x128xf32>
    %23 = vector.extract_strided_slice %22 {offsets = [0, 0], sizes = [2, 32], strides = [1, 1]} : vector<2x128xf32> to vector<2x32xf32>
    %cst_25 = arith.constant 5.000000e-01 : f32
    %24 = vector.broadcast %cst_25 : f32 to vector<2x32xf32>
    %25 = arith.mulf %23, %24 : vector<2x32xf32>
    %cst_26 = arith.constant 5.000000e-01 : f32
    %26 = vector.broadcast %cst_26 : f32 to vector<2x32xf32>
    %27 = arith.addf %25, %26 : vector<2x32xf32>
    %28 = vector.extract_strided_slice %22 {offsets = [0, 32], sizes = [2, 32], strides = [1, 1]} : vector<2x128xf32> to vector<2x32xf32>
    %cst_27 = arith.constant 5.000000e-01 : f32
    %29 = vector.broadcast %cst_27 : f32 to vector<2x32xf32>
    %30 = arith.mulf %28, %29 : vector<2x32xf32>
    %cst_28 = arith.constant 5.000000e-01 : f32
    %31 = vector.broadcast %cst_28 : f32 to vector<2x32xf32>
    %32 = arith.addf %30, %31 : vector<2x32xf32>
    %33 = vector.extract_strided_slice %22 {offsets = [0, 64], sizes = [2, 32], strides = [1, 1]} : vector<2x128xf32> to vector<2x32xf32>
    %34 = vector.extract_strided_slice %22 {offsets = [0, 96], sizes = [2, 32], strides = [1, 1]} : vector<2x128xf32> to vector<2x32xf32>
    %cst_29 = arith.constant 5.000000e-01 : f32
    %35 = vector.broadcast %cst_29 : f32 to vector<2x32xf32>
    %36 = arith.mulf %34, %35 : vector<2x32xf32>
    %cst_30 = arith.constant 5.000000e-01 : f32
    %37 = vector.broadcast %cst_30 : f32 to vector<2x32xf32>
    %38 = arith.addf %36, %37 : vector<2x32xf32>
    %39 = arith.mulf %27, %15 : vector<2x32xf32>
    %40 = arith.mulf %32, %33 : vector<2x32xf32>
    %41 = arith.addf %39, %40 : vector<2x32xf32>
    %42 = math.tanh %41 : vector<2x32xf32>
    %43 = arith.mulf %38, %42 : vector<2x32xf32>
    %44 = arith.truncf %43 : vector<2x32xf32> to vector<2x32xbf16>
    %cst_31 = arith.constant dense<0.000000e+00> : vector<2x128xf32>
    %45 = tpu.matmul %44, %1, %cst_31 {dimension_numbers = #tpu.dot_dimension_numbers<[1], [0], [0], [1], [0, 0, 1, 1], [], []>} : vector<2x32xbf16>, vector<32x128xbf16>, vector<2x128xf32> -> vector<2x128xf32>
    %46 = vector.broadcast %5 : vector<1x128xf32> to vector<2x128xf32>
    %47 = arith.addf %45, %46 : vector<2x128xf32>
    %48 = arith.truncf %13 : vector<2x32xf32> to vector<2x32xbf16>
    %cst_32 = arith.constant dense<0.000000e+00> : vector<2x128xf32>
    %49 = tpu.matmul %48, %3, %cst_32 {dimension_numbers = #tpu.dot_dimension_numbers<[1], [0], [0], [1], [0, 0, 1, 1], [], []>} : vector<2x32xbf16>, vector<32x128xbf16>, vector<2x128xf32> -> vector<2x128xf32>
    %50 = arith.addf %47, %49 : vector<2x128xf32>
    %51 = math.tanh %50 : vector<2x128xf32>
    %52 = vector.extract_strided_slice %51 {offsets = [0, 0], sizes = [2, 32], strides = [1, 1]} : vector<2x128xf32> to vector<2x32xf32>
    %cst_33 = arith.constant 5.000000e-01 : f32
    %53 = vector.broadcast %cst_33 : f32 to vector<2x32xf32>
    %54 = arith.mulf %52, %53 : vector<2x32xf32>
    %cst_34 = arith.constant 5.000000e-01 : f32
    %55 = vector.broadcast %cst_34 : f32 to vector<2x32xf32>
    %56 = arith.addf %54, %55 : vector<2x32xf32>
    %57 = vector.extract_strided_slice %51 {offsets = [0, 32], sizes = [2, 32], strides = [1, 1]} : vector<2x128xf32> to vector<2x32xf32>
    %cst_35 = arith.constant 5.000000e-01 : f32
    %58 = vector.broadcast %cst_35 : f32 to vector<2x32xf32>
    %59 = arith.mulf %57, %58 : vector<2x32xf32>
    %cst_36 = arith.constant 5.000000e-01 : f32
    %60 = vector.broadcast %cst_36 : f32 to vector<2x32xf32>
    %61 = arith.addf %59, %60 : vector<2x32xf32>
    %62 = vector.extract_strided_slice %51 {offsets = [0, 64], sizes = [2, 32], strides = [1, 1]} : vector<2x128xf32> to vector<2x32xf32>
    %63 = vector.extract_strided_slice %51 {offsets = [0, 96], sizes = [2, 32], strides = [1, 1]} : vector<2x128xf32> to vector<2x32xf32>
    %cst_37 = arith.constant 5.000000e-01 : f32
    %64 = vector.broadcast %cst_37 : f32 to vector<2x32xf32>
    %65 = arith.mulf %63, %64 : vector<2x32xf32>
    %cst_38 = arith.constant 5.000000e-01 : f32
    %66 = vector.broadcast %cst_38 : f32 to vector<2x32xf32>
    %67 = arith.addf %65, %66 : vector<2x32xf32>
    %68 = arith.mulf %56, %17 : vector<2x32xf32>
    %69 = arith.mulf %61, %62 : vector<2x32xf32>
    %70 = arith.addf %68, %69 : vector<2x32xf32>
    %71 = math.tanh %70 : vector<2x32xf32>
    %72 = arith.mulf %67, %71 : vector<2x32xf32>
    %73 = vector.extract_strided_slice %9 {offsets = [2, 0], sizes = [2, 128], strides = [1, 1]} : vector<16x128xf32> to vector<2x128xf32>
    %74 = arith.truncf %43 : vector<2x32xf32> to vector<2x32xbf16>
    %cst_39 = arith.constant dense<0.000000e+00> : vector<2x128xf32>
    %75 = tpu.matmul %74, %2, %cst_39 {dimension_numbers = #tpu.dot_dimension_numbers<[1], [0], [0], [1], [0, 0, 1, 1], [], []>} : vector<2x32xbf16>, vector<32x128xbf16>, vector<2x128xf32> -> vector<2x128xf32>
    %76 = arith.addf %73, %75 : vector<2x128xf32>
    %77 = math.tanh %76 : vector<2x128xf32>
    %78 = vector.extract_strided_slice %77 {offsets = [0, 0], sizes = [2, 32], strides = [1, 1]} : vector<2x128xf32> to vector<2x32xf32>
    %cst_40 = arith.constant 5.000000e-01 : f32
    %79 = vector.broadcast %cst_40 : f32 to vector<2x32xf32>
    %80 = arith.mulf %78, %79 : vector<2x32xf32>
    %cst_41 = arith.constant 5.000000e-01 : f32
    %81 = vector.broadcast %cst_41 : f32 to vector<2x32xf32>
    %82 = arith.addf %80, %81 : vector<2x32xf32>
    %83 = vector.extract_strided_slice %77 {offsets = [0, 32], sizes = [2, 32], strides = [1, 1]} : vector<2x128xf32> to vector<2x32xf32>
    %cst_42 = arith.constant 5.000000e-01 : f32
    %84 = vector.broadcast %cst_42 : f32 to vector<2x32xf32>
    %85 = arith.mulf %83, %84 : vector<2x32xf32>
    %cst_43 = arith.constant 5.000000e-01 : f32
    %86 = vector.broadcast %cst_43 : f32 to vector<2x32xf32>
    %87 = arith.addf %85, %86 : vector<2x32xf32>
    %88 = vector.extract_strided_slice %77 {offsets = [0, 64], sizes = [2, 32], strides = [1, 1]} : vector<2x128xf32> to vector<2x32xf32>
    %89 = vector.extract_strided_slice %77 {offsets = [0, 96], sizes = [2, 32], strides = [1, 1]} : vector<2x128xf32> to vector<2x32xf32>
    %cst_44 = arith.constant 5.000000e-01 : f32
    %90 = vector.broadcast %cst_44 : f32 to vector<2x32xf32>
    %91 = arith.mulf %89, %90 : vector<2x32xf32>
    %cst_45 = arith.constant 5.000000e-01 : f32
    %92 = vector.broadcast %cst_45 : f32 to vector<2x32xf32>
    %93 = arith.addf %91, %92 : vector<2x32xf32>
    %94 = arith.mulf %82, %41 : vector<2x32xf32>
    %95 = arith.mulf %87, %88 : vector<2x32xf32>
    %96 = arith.addf %94, %95 : vector<2x32xf32>
    %97 = math.tanh %96 : vector<2x32xf32>
    %98 = arith.mulf %93, %97 : vector<2x32xf32>
    %99 = arith.truncf %98 : vector<2x32xf32> to vector<2x32xbf16>
    %cst_46 = arith.constant dense<0.000000e+00> : vector<2x128xf32>
    %100 = tpu.matmul %99, %1, %cst_46 {dimension_numbers = #tpu.dot_dimension_numbers<[1], [0], [0], [1], [0, 0, 1, 1], [], []>} : vector<2x32xbf16>, vector<32x128xbf16>, vector<2x128xf32> -> vector<2x128xf32>
    %101 = vector.broadcast %5 : vector<1x128xf32> to vector<2x128xf32>
    %102 = arith.addf %100, %101 : vector<2x128xf32>
    %103 = arith.truncf %72 : vector<2x32xf32> to vector<2x32xbf16>
    %cst_47 = arith.constant dense<0.000000e+00> : vector<2x128xf32>
    %104 = tpu.matmul %103, %3, %cst_47 {dimension_numbers = #tpu.dot_dimension_numbers<[1], [0], [0], [1], [0, 0, 1, 1], [], []>} : vector<2x32xbf16>, vector<32x128xbf16>, vector<2x128xf32> -> vector<2x128xf32>
    %105 = arith.addf %102, %104 : vector<2x128xf32>
    %106 = math.tanh %105 : vector<2x128xf32>
    %107 = vector.extract_strided_slice %106 {offsets = [0, 0], sizes = [2, 32], strides = [1, 1]} : vector<2x128xf32> to vector<2x32xf32>
    %cst_48 = arith.constant 5.000000e-01 : f32
    %108 = vector.broadcast %cst_48 : f32 to vector<2x32xf32>
    %109 = arith.mulf %107, %108 : vector<2x32xf32>
    %cst_49 = arith.constant 5.000000e-01 : f32
    %110 = vector.broadcast %cst_49 : f32 to vector<2x32xf32>
    %111 = arith.addf %109, %110 : vector<2x32xf32>
    %112 = vector.extract_strided_slice %106 {offsets = [0, 32], sizes = [2, 32], strides = [1, 1]} : vector<2x128xf32> to vector<2x32xf32>
    %cst_50 = arith.constant 5.000000e-01 : f32
    %113 = vector.broadcast %cst_50 : f32 to vector<2x32xf32>
    %114 = arith.mulf %112, %113 : vector<2x32xf32>
    %cst_51 = arith.constant 5.000000e-01 : f32
    %115 = vector.broadcast %cst_51 : f32 to vector<2x32xf32>
    %116 = arith.addf %114, %115 : vector<2x32xf32>
    %117 = vector.extract_strided_slice %106 {offsets = [0, 64], sizes = [2, 32], strides = [1, 1]} : vector<2x128xf32> to vector<2x32xf32>
    %118 = vector.extract_strided_slice %106 {offsets = [0, 96], sizes = [2, 32], strides = [1, 1]} : vector<2x128xf32> to vector<2x32xf32>
    %cst_52 = arith.constant 5.000000e-01 : f32
    %119 = vector.broadcast %cst_52 : f32 to vector<2x32xf32>
    %120 = arith.mulf %118, %119 : vector<2x32xf32>
    %cst_53 = arith.constant 5.000000e-01 : f32
    %121 = vector.broadcast %cst_53 : f32 to vector<2x32xf32>
    %122 = arith.addf %120, %121 : vector<2x32xf32>
    %123 = arith.mulf %111, %70 : vector<2x32xf32>
    %124 = arith.mulf %116, %117 : vector<2x32xf32>
    %125 = arith.addf %123, %124 : vector<2x32xf32>
    %126 = math.tanh %125 : vector<2x32xf32>
    %127 = arith.mulf %122, %126 : vector<2x32xf32>
    %128 = vector.extract_strided_slice %9 {offsets = [4, 0], sizes = [2, 128], strides = [1, 1]} : vector<16x128xf32> to vector<2x128xf32>
    %129 = arith.truncf %98 : vector<2x32xf32> to vector<2x32xbf16>
    %cst_54 = arith.constant dense<0.000000e+00> : vector<2x128xf32>
    %130 = tpu.matmul %129, %2, %cst_54 {dimension_numbers = #tpu.dot_dimension_numbers<[1], [0], [0], [1], [0, 0, 1, 1], [], []>} : vector<2x32xbf16>, vector<32x128xbf16>, vector<2x128xf32> -> vector<2x128xf32>
    %131 = arith.addf %128, %130 : vector<2x128xf32>
    %132 = math.tanh %131 : vector<2x128xf32>
    %133 = vector.extract_strided_slice %132 {offsets = [0, 0], sizes = [2, 32], strides = [1, 1]} : vector<2x128xf32> to vector<2x32xf32>
    %cst_55 = arith.constant 5.000000e-01 : f32
    %134 = vector.broadcast %cst_55 : f32 to vector<2x32xf32>
    %135 = arith.mulf %133, %134 : vector<2x32xf32>
    %cst_56 = arith.constant 5.000000e-01 : f32
    %136 = vector.broadcast %cst_56 : f32 to vector<2x32xf32>
    %137 = arith.addf %135, %136 : vector<2x32xf32>
    %138 = vector.extract_strided_slice %132 {offsets = [0, 32], sizes = [2, 32], strides = [1, 1]} : vector<2x128xf32> to vector<2x32xf32>
    %cst_57 = arith.constant 5.000000e-01 : f32
    %139 = vector.broadcast %cst_57 : f32 to vector<2x32xf32>
    %140 = arith.mulf %138, %139 : vector<2x32xf32>
    %cst_58 = arith.constant 5.000000e-01 : f32
    %141 = vector.broadcast %cst_58 : f32 to vector<2x32xf32>
    %142 = arith.addf %140, %141 : vector<2x32xf32>
    %143 = vector.extract_strided_slice %132 {offsets = [0, 64], sizes = [2, 32], strides = [1, 1]} : vector<2x128xf32> to vector<2x32xf32>
    %144 = vector.extract_strided_slice %132 {offsets = [0, 96], sizes = [2, 32], strides = [1, 1]} : vector<2x128xf32> to vector<2x32xf32>
    %cst_59 = arith.constant 5.000000e-01 : f32
    %145 = vector.broadcast %cst_59 : f32 to vector<2x32xf32>
    %146 = arith.mulf %144, %145 : vector<2x32xf32>
    %cst_60 = arith.constant 5.000000e-01 : f32
    %147 = vector.broadcast %cst_60 : f32 to vector<2x32xf32>
    %148 = arith.addf %146, %147 : vector<2x32xf32>
    %149 = arith.mulf %137, %96 : vector<2x32xf32>
    %150 = arith.mulf %142, %143 : vector<2x32xf32>
    %151 = arith.addf %149, %150 : vector<2x32xf32>
    %152 = math.tanh %151 : vector<2x32xf32>
    %153 = arith.mulf %148, %152 : vector<2x32xf32>
    %154 = arith.truncf %153 : vector<2x32xf32> to vector<2x32xbf16>
    %cst_61 = arith.constant dense<0.000000e+00> : vector<2x128xf32>
    %155 = tpu.matmul %154, %1, %cst_61 {dimension_numbers = #tpu.dot_dimension_numbers<[1], [0], [0], [1], [0, 0, 1, 1], [], []>} : vector<2x32xbf16>, vector<32x128xbf16>, vector<2x128xf32> -> vector<2x128xf32>
    %156 = vector.broadcast %5 : vector<1x128xf32> to vector<2x128xf32>
    %157 = arith.addf %155, %156 : vector<2x128xf32>
    %158 = arith.truncf %127 : vector<2x32xf32> to vector<2x32xbf16>
    %cst_62 = arith.constant dense<0.000000e+00> : vector<2x128xf32>
    %159 = tpu.matmul %158, %3, %cst_62 {dimension_numbers = #tpu.dot_dimension_numbers<[1], [0], [0], [1], [0, 0, 1, 1], [], []>} : vector<2x32xbf16>, vector<32x128xbf16>, vector<2x128xf32> -> vector<2x128xf32>
    %160 = arith.addf %157, %159 : vector<2x128xf32>
    %161 = math.tanh %160 : vector<2x128xf32>
    %162 = vector.extract_strided_slice %161 {offsets = [0, 0], sizes = [2, 32], strides = [1, 1]} : vector<2x128xf32> to vector<2x32xf32>
    %cst_63 = arith.constant 5.000000e-01 : f32
    %163 = vector.broadcast %cst_63 : f32 to vector<2x32xf32>
    %164 = arith.mulf %162, %163 : vector<2x32xf32>
    %cst_64 = arith.constant 5.000000e-01 : f32
    %165 = vector.broadcast %cst_64 : f32 to vector<2x32xf32>
    %166 = arith.addf %164, %165 : vector<2x32xf32>
    %167 = vector.extract_strided_slice %161 {offsets = [0, 32], sizes = [2, 32], strides = [1, 1]} : vector<2x128xf32> to vector<2x32xf32>
    %cst_65 = arith.constant 5.000000e-01 : f32
    %168 = vector.broadcast %cst_65 : f32 to vector<2x32xf32>
    %169 = arith.mulf %167, %168 : vector<2x32xf32>
    %cst_66 = arith.constant 5.000000e-01 : f32
    %170 = vector.broadcast %cst_66 : f32 to vector<2x32xf32>
    %171 = arith.addf %169, %170 : vector<2x32xf32>
    %172 = vector.extract_strided_slice %161 {offsets = [0, 64], sizes = [2, 32], strides = [1, 1]} : vector<2x128xf32> to vector<2x32xf32>
    %173 = vector.extract_strided_slice %161 {offsets = [0, 96], sizes = [2, 32], strides = [1, 1]} : vector<2x128xf32> to vector<2x32xf32>
    %cst_67 = arith.constant 5.000000e-01 : f32
    %174 = vector.broadcast %cst_67 : f32 to vector<2x32xf32>
    %175 = arith.mulf %173, %174 : vector<2x32xf32>
    %cst_68 = arith.constant 5.000000e-01 : f32
    %176 = vector.broadcast %cst_68 : f32 to vector<2x32xf32>
    %177 = arith.addf %175, %176 : vector<2x32xf32>
    %178 = arith.mulf %166, %125 : vector<2x32xf32>
    %179 = arith.mulf %171, %172 : vector<2x32xf32>
    %180 = arith.addf %178, %179 : vector<2x32xf32>
    %181 = math.tanh %180 : vector<2x32xf32>
    %182 = arith.mulf %177, %181 : vector<2x32xf32>
    %183 = vector.extract_strided_slice %9 {offsets = [6, 0], sizes = [2, 128], strides = [1, 1]} : vector<16x128xf32> to vector<2x128xf32>
    %184 = arith.truncf %153 : vector<2x32xf32> to vector<2x32xbf16>
    %cst_69 = arith.constant dense<0.000000e+00> : vector<2x128xf32>
    %185 = tpu.matmul %184, %2, %cst_69 {dimension_numbers = #tpu.dot_dimension_numbers<[1], [0], [0], [1], [0, 0, 1, 1], [], []>} : vector<2x32xbf16>, vector<32x128xbf16>, vector<2x128xf32> -> vector<2x128xf32>
    %186 = arith.addf %183, %185 : vector<2x128xf32>
    %187 = math.tanh %186 : vector<2x128xf32>
    %188 = vector.extract_strided_slice %187 {offsets = [0, 0], sizes = [2, 32], strides = [1, 1]} : vector<2x128xf32> to vector<2x32xf32>
    %cst_70 = arith.constant 5.000000e-01 : f32
    %189 = vector.broadcast %cst_70 : f32 to vector<2x32xf32>
    %190 = arith.mulf %188, %189 : vector<2x32xf32>
    %cst_71 = arith.constant 5.000000e-01 : f32
    %191 = vector.broadcast %cst_71 : f32 to vector<2x32xf32>
    %192 = arith.addf %190, %191 : vector<2x32xf32>
    %193 = vector.extract_strided_slice %187 {offsets = [0, 32], sizes = [2, 32], strides = [1, 1]} : vector<2x128xf32> to vector<2x32xf32>
    %cst_72 = arith.constant 5.000000e-01 : f32
    %194 = vector.broadcast %cst_72 : f32 to vector<2x32xf32>
    %195 = arith.mulf %193, %194 : vector<2x32xf32>
    %cst_73 = arith.constant 5.000000e-01 : f32
    %196 = vector.broadcast %cst_73 : f32 to vector<2x32xf32>
    %197 = arith.addf %195, %196 : vector<2x32xf32>
    %198 = vector.extract_strided_slice %187 {offsets = [0, 64], sizes = [2, 32], strides = [1, 1]} : vector<2x128xf32> to vector<2x32xf32>
    %199 = vector.extract_strided_slice %187 {offsets = [0, 96], sizes = [2, 32], strides = [1, 1]} : vector<2x128xf32> to vector<2x32xf32>
    %cst_74 = arith.constant 5.000000e-01 : f32
    %200 = vector.broadcast %cst_74 : f32 to vector<2x32xf32>
    %201 = arith.mulf %199, %200 : vector<2x32xf32>
    %cst_75 = arith.constant 5.000000e-01 : f32
    %202 = vector.broadcast %cst_75 : f32 to vector<2x32xf32>
    %203 = arith.addf %201, %202 : vector<2x32xf32>
    %204 = arith.mulf %192, %151 : vector<2x32xf32>
    %205 = arith.mulf %197, %198 : vector<2x32xf32>
    %206 = arith.addf %204, %205 : vector<2x32xf32>
    %207 = math.tanh %206 : vector<2x32xf32>
    %208 = arith.mulf %203, %207 : vector<2x32xf32>
    %209 = arith.truncf %208 : vector<2x32xf32> to vector<2x32xbf16>
    %cst_76 = arith.constant dense<0.000000e+00> : vector<2x128xf32>
    %210 = tpu.matmul %209, %1, %cst_76 {dimension_numbers = #tpu.dot_dimension_numbers<[1], [0], [0], [1], [0, 0, 1, 1], [], []>} : vector<2x32xbf16>, vector<32x128xbf16>, vector<2x128xf32> -> vector<2x128xf32>
    %211 = vector.broadcast %5 : vector<1x128xf32> to vector<2x128xf32>
    %212 = arith.addf %210, %211 : vector<2x128xf32>
    %213 = arith.truncf %182 : vector<2x32xf32> to vector<2x32xbf16>
    %cst_77 = arith.constant dense<0.000000e+00> : vector<2x128xf32>
    %214 = tpu.matmul %213, %3, %cst_77 {dimension_numbers = #tpu.dot_dimension_numbers<[1], [0], [0], [1], [0, 0, 1, 1], [], []>} : vector<2x32xbf16>, vector<32x128xbf16>, vector<2x128xf32> -> vector<2x128xf32>
    %215 = arith.addf %212, %214 : vector<2x128xf32>
    %216 = math.tanh %215 : vector<2x128xf32>
    %217 = vector.extract_strided_slice %216 {offsets = [0, 0], sizes = [2, 32], strides = [1, 1]} : vector<2x128xf32> to vector<2x32xf32>
    %cst_78 = arith.constant 5.000000e-01 : f32
    %218 = vector.broadcast %cst_78 : f32 to vector<2x32xf32>
    %219 = arith.mulf %217, %218 : vector<2x32xf32>
    %cst_79 = arith.constant 5.000000e-01 : f32
    %220 = vector.broadcast %cst_79 : f32 to vector<2x32xf32>
    %221 = arith.addf %219, %220 : vector<2x32xf32>
    %222 = vector.extract_strided_slice %216 {offsets = [0, 32], sizes = [2, 32], strides = [1, 1]} : vector<2x128xf32> to vector<2x32xf32>
    %cst_80 = arith.constant 5.000000e-01 : f32
    %223 = vector.broadcast %cst_80 : f32 to vector<2x32xf32>
    %224 = arith.mulf %222, %223 : vector<2x32xf32>
    %cst_81 = arith.constant 5.000000e-01 : f32
    %225 = vector.broadcast %cst_81 : f32 to vector<2x32xf32>
    %226 = arith.addf %224, %225 : vector<2x32xf32>
    %227 = vector.extract_strided_slice %216 {offsets = [0, 64], sizes = [2, 32], strides = [1, 1]} : vector<2x128xf32> to vector<2x32xf32>
    %228 = vector.extract_strided_slice %216 {offsets = [0, 96], sizes = [2, 32], strides = [1, 1]} : vector<2x128xf32> to vector<2x32xf32>
    %cst_82 = arith.constant 5.000000e-01 : f32
    %229 = vector.broadcast %cst_82 : f32 to vector<2x32xf32>
    %230 = arith.mulf %228, %229 : vector<2x32xf32>
    %cst_83 = arith.constant 5.000000e-01 : f32
    %231 = vector.broadcast %cst_83 : f32 to vector<2x32xf32>
    %232 = arith.addf %230, %231 : vector<2x32xf32>
    %233 = arith.mulf %221, %180 : vector<2x32xf32>
    %234 = arith.mulf %226, %227 : vector<2x32xf32>
    %235 = arith.addf %233, %234 : vector<2x32xf32>
    %236 = math.tanh %235 : vector<2x32xf32>
    %237 = arith.mulf %232, %236 : vector<2x32xf32>
    %238 = vector.extract_strided_slice %9 {offsets = [8, 0], sizes = [2, 128], strides = [1, 1]} : vector<16x128xf32> to vector<2x128xf32>
    %239 = arith.truncf %208 : vector<2x32xf32> to vector<2x32xbf16>
    %cst_84 = arith.constant dense<0.000000e+00> : vector<2x128xf32>
    %240 = tpu.matmul %239, %2, %cst_84 {dimension_numbers = #tpu.dot_dimension_numbers<[1], [0], [0], [1], [0, 0, 1, 1], [], []>} : vector<2x32xbf16>, vector<32x128xbf16>, vector<2x128xf32> -> vector<2x128xf32>
    %241 = arith.addf %238, %240 : vector<2x128xf32>
    %242 = math.tanh %241 : vector<2x128xf32>
    %243 = vector.extract_strided_slice %242 {offsets = [0, 0], sizes = [2, 32], strides = [1, 1]} : vector<2x128xf32> to vector<2x32xf32>
    %cst_85 = arith.constant 5.000000e-01 : f32
    %244 = vector.broadcast %cst_85 : f32 to vector<2x32xf32>
    %245 = arith.mulf %243, %244 : vector<2x32xf32>
    %cst_86 = arith.constant 5.000000e-01 : f32
    %246 = vector.broadcast %cst_86 : f32 to vector<2x32xf32>
    %247 = arith.addf %245, %246 : vector<2x32xf32>
    %248 = vector.extract_strided_slice %242 {offsets = [0, 32], sizes = [2, 32], strides = [1, 1]} : vector<2x128xf32> to vector<2x32xf32>
    %cst_87 = arith.constant 5.000000e-01 : f32
    %249 = vector.broadcast %cst_87 : f32 to vector<2x32xf32>
    %250 = arith.mulf %248, %249 : vector<2x32xf32>
    %cst_88 = arith.constant 5.000000e-01 : f32
    %251 = vector.broadcast %cst_88 : f32 to vector<2x32xf32>
    %252 = arith.addf %250, %251 : vector<2x32xf32>
    %253 = vector.extract_strided_slice %242 {offsets = [0, 64], sizes = [2, 32], strides = [1, 1]} : vector<2x128xf32> to vector<2x32xf32>
    %254 = vector.extract_strided_slice %242 {offsets = [0, 96], sizes = [2, 32], strides = [1, 1]} : vector<2x128xf32> to vector<2x32xf32>
    %cst_89 = arith.constant 5.000000e-01 : f32
    %255 = vector.broadcast %cst_89 : f32 to vector<2x32xf32>
    %256 = arith.mulf %254, %255 : vector<2x32xf32>
    %cst_90 = arith.constant 5.000000e-01 : f32
    %257 = vector.broadcast %cst_90 : f32 to vector<2x32xf32>
    %258 = arith.addf %256, %257 : vector<2x32xf32>
    %259 = arith.mulf %247, %206 : vector<2x32xf32>
    %260 = arith.mulf %252, %253 : vector<2x32xf32>
    %261 = arith.addf %259, %260 : vector<2x32xf32>
    %262 = math.tanh %261 : vector<2x32xf32>
    %263 = arith.mulf %258, %262 : vector<2x32xf32>
    %264 = arith.truncf %263 : vector<2x32xf32> to vector<2x32xbf16>
    %cst_91 = arith.constant dense<0.000000e+00> : vector<2x128xf32>
    %265 = tpu.matmul %264, %1, %cst_91 {dimension_numbers = #tpu.dot_dimension_numbers<[1], [0], [0], [1], [0, 0, 1, 1], [], []>} : vector<2x32xbf16>, vector<32x128xbf16>, vector<2x128xf32> -> vector<2x128xf32>
    %266 = vector.broadcast %5 : vector<1x128xf32> to vector<2x128xf32>
    %267 = arith.addf %265, %266 : vector<2x128xf32>
    %268 = arith.truncf %237 : vector<2x32xf32> to vector<2x32xbf16>
    %cst_92 = arith.constant dense<0.000000e+00> : vector<2x128xf32>
    %269 = tpu.matmul %268, %3, %cst_92 {dimension_numbers = #tpu.dot_dimension_numbers<[1], [0], [0], [1], [0, 0, 1, 1], [], []>} : vector<2x32xbf16>, vector<32x128xbf16>, vector<2x128xf32> -> vector<2x128xf32>
    %270 = arith.addf %267, %269 : vector<2x128xf32>
    %271 = math.tanh %270 : vector<2x128xf32>
    %272 = vector.extract_strided_slice %271 {offsets = [0, 0], sizes = [2, 32], strides = [1, 1]} : vector<2x128xf32> to vector<2x32xf32>
    %cst_93 = arith.constant 5.000000e-01 : f32
    %273 = vector.broadcast %cst_93 : f32 to vector<2x32xf32>
    %274 = arith.mulf %272, %273 : vector<2x32xf32>
    %cst_94 = arith.constant 5.000000e-01 : f32
    %275 = vector.broadcast %cst_94 : f32 to vector<2x32xf32>
    %276 = arith.addf %274, %275 : vector<2x32xf32>
    %277 = vector.extract_strided_slice %271 {offsets = [0, 32], sizes = [2, 32], strides = [1, 1]} : vector<2x128xf32> to vector<2x32xf32>
    %cst_95 = arith.constant 5.000000e-01 : f32
    %278 = vector.broadcast %cst_95 : f32 to vector<2x32xf32>
    %279 = arith.mulf %277, %278 : vector<2x32xf32>
    %cst_96 = arith.constant 5.000000e-01 : f32
    %280 = vector.broadcast %cst_96 : f32 to vector<2x32xf32>
    %281 = arith.addf %279, %280 : vector<2x32xf32>
    %282 = vector.extract_strided_slice %271 {offsets = [0, 64], sizes = [2, 32], strides = [1, 1]} : vector<2x128xf32> to vector<2x32xf32>
    %283 = vector.extract_strided_slice %271 {offsets = [0, 96], sizes = [2, 32], strides = [1, 1]} : vector<2x128xf32> to vector<2x32xf32>
    %cst_97 = arith.constant 5.000000e-01 : f32
    %284 = vector.broadcast %cst_97 : f32 to vector<2x32xf32>
    %285 = arith.mulf %283, %284 : vector<2x32xf32>
    %cst_98 = arith.constant 5.000000e-01 : f32
    %286 = vector.broadcast %cst_98 : f32 to vector<2x32xf32>
    %287 = arith.addf %285, %286 : vector<2x32xf32>
    %288 = arith.mulf %276, %235 : vector<2x32xf32>
    %289 = arith.mulf %281, %282 : vector<2x32xf32>
    %290 = arith.addf %288, %289 : vector<2x32xf32>
    %291 = math.tanh %290 : vector<2x32xf32>
    %292 = arith.mulf %287, %291 : vector<2x32xf32>
    %293 = vector.extract_strided_slice %9 {offsets = [10, 0], sizes = [2, 128], strides = [1, 1]} : vector<16x128xf32> to vector<2x128xf32>
    %294 = arith.truncf %263 : vector<2x32xf32> to vector<2x32xbf16>
    %cst_99 = arith.constant dense<0.000000e+00> : vector<2x128xf32>
    %295 = tpu.matmul %294, %2, %cst_99 {dimension_numbers = #tpu.dot_dimension_numbers<[1], [0], [0], [1], [0, 0, 1, 1], [], []>} : vector<2x32xbf16>, vector<32x128xbf16>, vector<2x128xf32> -> vector<2x128xf32>
    %296 = arith.addf %293, %295 : vector<2x128xf32>
    %297 = math.tanh %296 : vector<2x128xf32>
    %298 = vector.extract_strided_slice %297 {offsets = [0, 0], sizes = [2, 32], strides = [1, 1]} : vector<2x128xf32> to vector<2x32xf32>
    %cst_100 = arith.constant 5.000000e-01 : f32
    %299 = vector.broadcast %cst_100 : f32 to vector<2x32xf32>
    %300 = arith.mulf %298, %299 : vector<2x32xf32>
    %cst_101 = arith.constant 5.000000e-01 : f32
    %301 = vector.broadcast %cst_101 : f32 to vector<2x32xf32>
    %302 = arith.addf %300, %301 : vector<2x32xf32>
    %303 = vector.extract_strided_slice %297 {offsets = [0, 32], sizes = [2, 32], strides = [1, 1]} : vector<2x128xf32> to vector<2x32xf32>
    %cst_102 = arith.constant 5.000000e-01 : f32
    %304 = vector.broadcast %cst_102 : f32 to vector<2x32xf32>
    %305 = arith.mulf %303, %304 : vector<2x32xf32>
    %cst_103 = arith.constant 5.000000e-01 : f32
    %306 = vector.broadcast %cst_103 : f32 to vector<2x32xf32>
    %307 = arith.addf %305, %306 : vector<2x32xf32>
    %308 = vector.extract_strided_slice %297 {offsets = [0, 64], sizes = [2, 32], strides = [1, 1]} : vector<2x128xf32> to vector<2x32xf32>
    %309 = vector.extract_strided_slice %297 {offsets = [0, 96], sizes = [2, 32], strides = [1, 1]} : vector<2x128xf32> to vector<2x32xf32>
    %cst_104 = arith.constant 5.000000e-01 : f32
    %310 = vector.broadcast %cst_104 : f32 to vector<2x32xf32>
    %311 = arith.mulf %309, %310 : vector<2x32xf32>
    %cst_105 = arith.constant 5.000000e-01 : f32
    %312 = vector.broadcast %cst_105 : f32 to vector<2x32xf32>
    %313 = arith.addf %311, %312 : vector<2x32xf32>
    %314 = arith.mulf %302, %261 : vector<2x32xf32>
    %315 = arith.mulf %307, %308 : vector<2x32xf32>
    %316 = arith.addf %314, %315 : vector<2x32xf32>
    %317 = math.tanh %316 : vector<2x32xf32>
    %318 = arith.mulf %313, %317 : vector<2x32xf32>
    %319 = arith.truncf %318 : vector<2x32xf32> to vector<2x32xbf16>
    %cst_106 = arith.constant dense<0.000000e+00> : vector<2x128xf32>
    %320 = tpu.matmul %319, %1, %cst_106 {dimension_numbers = #tpu.dot_dimension_numbers<[1], [0], [0], [1], [0, 0, 1, 1], [], []>} : vector<2x32xbf16>, vector<32x128xbf16>, vector<2x128xf32> -> vector<2x128xf32>
    %321 = vector.broadcast %5 : vector<1x128xf32> to vector<2x128xf32>
    %322 = arith.addf %320, %321 : vector<2x128xf32>
    %323 = arith.truncf %292 : vector<2x32xf32> to vector<2x32xbf16>
    %cst_107 = arith.constant dense<0.000000e+00> : vector<2x128xf32>
    %324 = tpu.matmul %323, %3, %cst_107 {dimension_numbers = #tpu.dot_dimension_numbers<[1], [0], [0], [1], [0, 0, 1, 1], [], []>} : vector<2x32xbf16>, vector<32x128xbf16>, vector<2x128xf32> -> vector<2x128xf32>
    %325 = arith.addf %322, %324 : vector<2x128xf32>
    %326 = math.tanh %325 : vector<2x128xf32>
    %327 = vector.extract_strided_slice %326 {offsets = [0, 0], sizes = [2, 32], strides = [1, 1]} : vector<2x128xf32> to vector<2x32xf32>
    %cst_108 = arith.constant 5.000000e-01 : f32
    %328 = vector.broadcast %cst_108 : f32 to vector<2x32xf32>
    %329 = arith.mulf %327, %328 : vector<2x32xf32>
    %cst_109 = arith.constant 5.000000e-01 : f32
    %330 = vector.broadcast %cst_109 : f32 to vector<2x32xf32>
    %331 = arith.addf %329, %330 : vector<2x32xf32>
    %332 = vector.extract_strided_slice %326 {offsets = [0, 32], sizes = [2, 32], strides = [1, 1]} : vector<2x128xf32> to vector<2x32xf32>
    %cst_110 = arith.constant 5.000000e-01 : f32
    %333 = vector.broadcast %cst_110 : f32 to vector<2x32xf32>
    %334 = arith.mulf %332, %333 : vector<2x32xf32>
    %cst_111 = arith.constant 5.000000e-01 : f32
    %335 = vector.broadcast %cst_111 : f32 to vector<2x32xf32>
    %336 = arith.addf %334, %335 : vector<2x32xf32>
    %337 = vector.extract_strided_slice %326 {offsets = [0, 64], sizes = [2, 32], strides = [1, 1]} : vector<2x128xf32> to vector<2x32xf32>
    %338 = vector.extract_strided_slice %326 {offsets = [0, 96], sizes = [2, 32], strides = [1, 1]} : vector<2x128xf32> to vector<2x32xf32>
    %cst_112 = arith.constant 5.000000e-01 : f32
    %339 = vector.broadcast %cst_112 : f32 to vector<2x32xf32>
    %340 = arith.mulf %338, %339 : vector<2x32xf32>
    %cst_113 = arith.constant 5.000000e-01 : f32
    %341 = vector.broadcast %cst_113 : f32 to vector<2x32xf32>
    %342 = arith.addf %340, %341 : vector<2x32xf32>
    %343 = arith.mulf %331, %290 : vector<2x32xf32>
    %344 = arith.mulf %336, %337 : vector<2x32xf32>
    %345 = arith.addf %343, %344 : vector<2x32xf32>
    %346 = math.tanh %345 : vector<2x32xf32>
    %347 = arith.mulf %342, %346 : vector<2x32xf32>
    %348 = vector.extract_strided_slice %9 {offsets = [12, 0], sizes = [2, 128], strides = [1, 1]} : vector<16x128xf32> to vector<2x128xf32>
    %349 = arith.truncf %318 : vector<2x32xf32> to vector<2x32xbf16>
    %cst_114 = arith.constant dense<0.000000e+00> : vector<2x128xf32>
    %350 = tpu.matmul %349, %2, %cst_114 {dimension_numbers = #tpu.dot_dimension_numbers<[1], [0], [0], [1], [0, 0, 1, 1], [], []>} : vector<2x32xbf16>, vector<32x128xbf16>, vector<2x128xf32> -> vector<2x128xf32>
    %351 = arith.addf %348, %350 : vector<2x128xf32>
    %352 = math.tanh %351 : vector<2x128xf32>
    %353 = vector.extract_strided_slice %352 {offsets = [0, 0], sizes = [2, 32], strides = [1, 1]} : vector<2x128xf32> to vector<2x32xf32>
    %cst_115 = arith.constant 5.000000e-01 : f32
    %354 = vector.broadcast %cst_115 : f32 to vector<2x32xf32>
    %355 = arith.mulf %353, %354 : vector<2x32xf32>
    %cst_116 = arith.constant 5.000000e-01 : f32
    %356 = vector.broadcast %cst_116 : f32 to vector<2x32xf32>
    %357 = arith.addf %355, %356 : vector<2x32xf32>
    %358 = vector.extract_strided_slice %352 {offsets = [0, 32], sizes = [2, 32], strides = [1, 1]} : vector<2x128xf32> to vector<2x32xf32>
    %cst_117 = arith.constant 5.000000e-01 : f32
    %359 = vector.broadcast %cst_117 : f32 to vector<2x32xf32>
    %360 = arith.mulf %358, %359 : vector<2x32xf32>
    %cst_118 = arith.constant 5.000000e-01 : f32
    %361 = vector.broadcast %cst_118 : f32 to vector<2x32xf32>
    %362 = arith.addf %360, %361 : vector<2x32xf32>
    %363 = vector.extract_strided_slice %352 {offsets = [0, 64], sizes = [2, 32], strides = [1, 1]} : vector<2x128xf32> to vector<2x32xf32>
    %364 = vector.extract_strided_slice %352 {offsets = [0, 96], sizes = [2, 32], strides = [1, 1]} : vector<2x128xf32> to vector<2x32xf32>
    %cst_119 = arith.constant 5.000000e-01 : f32
    %365 = vector.broadcast %cst_119 : f32 to vector<2x32xf32>
    %366 = arith.mulf %364, %365 : vector<2x32xf32>
    %cst_120 = arith.constant 5.000000e-01 : f32
    %367 = vector.broadcast %cst_120 : f32 to vector<2x32xf32>
    %368 = arith.addf %366, %367 : vector<2x32xf32>
    %369 = arith.mulf %357, %316 : vector<2x32xf32>
    %370 = arith.mulf %362, %363 : vector<2x32xf32>
    %371 = arith.addf %369, %370 : vector<2x32xf32>
    %372 = math.tanh %371 : vector<2x32xf32>
    %373 = arith.mulf %368, %372 : vector<2x32xf32>
    %374 = arith.truncf %373 : vector<2x32xf32> to vector<2x32xbf16>
    %cst_121 = arith.constant dense<0.000000e+00> : vector<2x128xf32>
    %375 = tpu.matmul %374, %1, %cst_121 {dimension_numbers = #tpu.dot_dimension_numbers<[1], [0], [0], [1], [0, 0, 1, 1], [], []>} : vector<2x32xbf16>, vector<32x128xbf16>, vector<2x128xf32> -> vector<2x128xf32>
    %376 = vector.broadcast %5 : vector<1x128xf32> to vector<2x128xf32>
    %377 = arith.addf %375, %376 : vector<2x128xf32>
    %378 = arith.truncf %347 : vector<2x32xf32> to vector<2x32xbf16>
    %cst_122 = arith.constant dense<0.000000e+00> : vector<2x128xf32>
    %379 = tpu.matmul %378, %3, %cst_122 {dimension_numbers = #tpu.dot_dimension_numbers<[1], [0], [0], [1], [0, 0, 1, 1], [], []>} : vector<2x32xbf16>, vector<32x128xbf16>, vector<2x128xf32> -> vector<2x128xf32>
    %380 = arith.addf %377, %379 : vector<2x128xf32>
    %381 = math.tanh %380 : vector<2x128xf32>
    %382 = vector.extract_strided_slice %381 {offsets = [0, 0], sizes = [2, 32], strides = [1, 1]} : vector<2x128xf32> to vector<2x32xf32>
    %cst_123 = arith.constant 5.000000e-01 : f32
    %383 = vector.broadcast %cst_123 : f32 to vector<2x32xf32>
    %384 = arith.mulf %382, %383 : vector<2x32xf32>
    %cst_124 = arith.constant 5.000000e-01 : f32
    %385 = vector.broadcast %cst_124 : f32 to vector<2x32xf32>
    %386 = arith.addf %384, %385 : vector<2x32xf32>
    %387 = vector.extract_strided_slice %381 {offsets = [0, 32], sizes = [2, 32], strides = [1, 1]} : vector<2x128xf32> to vector<2x32xf32>
    %cst_125 = arith.constant 5.000000e-01 : f32
    %388 = vector.broadcast %cst_125 : f32 to vector<2x32xf32>
    %389 = arith.mulf %387, %388 : vector<2x32xf32>
    %cst_126 = arith.constant 5.000000e-01 : f32
    %390 = vector.broadcast %cst_126 : f32 to vector<2x32xf32>
    %391 = arith.addf %389, %390 : vector<2x32xf32>
    %392 = vector.extract_strided_slice %381 {offsets = [0, 64], sizes = [2, 32], strides = [1, 1]} : vector<2x128xf32> to vector<2x32xf32>
    %393 = vector.extract_strided_slice %381 {offsets = [0, 96], sizes = [2, 32], strides = [1, 1]} : vector<2x128xf32> to vector<2x32xf32>
    %cst_127 = arith.constant 5.000000e-01 : f32
    %394 = vector.broadcast %cst_127 : f32 to vector<2x32xf32>
    %395 = arith.mulf %393, %394 : vector<2x32xf32>
    %cst_128 = arith.constant 5.000000e-01 : f32
    %396 = vector.broadcast %cst_128 : f32 to vector<2x32xf32>
    %397 = arith.addf %395, %396 : vector<2x32xf32>
    %398 = arith.mulf %386, %345 : vector<2x32xf32>
    %399 = arith.mulf %391, %392 : vector<2x32xf32>
    %400 = arith.addf %398, %399 : vector<2x32xf32>
    %401 = math.tanh %400 : vector<2x32xf32>
    %402 = arith.mulf %397, %401 : vector<2x32xf32>
    %403 = vector.extract_strided_slice %9 {offsets = [14, 0], sizes = [2, 128], strides = [1, 1]} : vector<16x128xf32> to vector<2x128xf32>
    %404 = arith.truncf %373 : vector<2x32xf32> to vector<2x32xbf16>
    %cst_129 = arith.constant dense<0.000000e+00> : vector<2x128xf32>
    %405 = tpu.matmul %404, %2, %cst_129 {dimension_numbers = #tpu.dot_dimension_numbers<[1], [0], [0], [1], [0, 0, 1, 1], [], []>} : vector<2x32xbf16>, vector<32x128xbf16>, vector<2x128xf32> -> vector<2x128xf32>
    %406 = arith.addf %403, %405 : vector<2x128xf32>
    %407 = math.tanh %406 : vector<2x128xf32>
    %408 = vector.extract_strided_slice %407 {offsets = [0, 0], sizes = [2, 32], strides = [1, 1]} : vector<2x128xf32> to vector<2x32xf32>
    %cst_130 = arith.constant 5.000000e-01 : f32
    %409 = vector.broadcast %cst_130 : f32 to vector<2x32xf32>
    %410 = arith.mulf %408, %409 : vector<2x32xf32>
    %cst_131 = arith.constant 5.000000e-01 : f32
    %411 = vector.broadcast %cst_131 : f32 to vector<2x32xf32>
    %412 = arith.addf %410, %411 : vector<2x32xf32>
    %413 = vector.extract_strided_slice %407 {offsets = [0, 32], sizes = [2, 32], strides = [1, 1]} : vector<2x128xf32> to vector<2x32xf32>
    %cst_132 = arith.constant 5.000000e-01 : f32
    %414 = vector.broadcast %cst_132 : f32 to vector<2x32xf32>
    %415 = arith.mulf %413, %414 : vector<2x32xf32>
    %cst_133 = arith.constant 5.000000e-01 : f32
    %416 = vector.broadcast %cst_133 : f32 to vector<2x32xf32>
    %417 = arith.addf %415, %416 : vector<2x32xf32>
    %418 = vector.extract_strided_slice %407 {offsets = [0, 64], sizes = [2, 32], strides = [1, 1]} : vector<2x128xf32> to vector<2x32xf32>
    %419 = vector.extract_strided_slice %407 {offsets = [0, 96], sizes = [2, 32], strides = [1, 1]} : vector<2x128xf32> to vector<2x32xf32>
    %cst_134 = arith.constant 5.000000e-01 : f32
    %420 = vector.broadcast %cst_134 : f32 to vector<2x32xf32>
    %421 = arith.mulf %419, %420 : vector<2x32xf32>
    %cst_135 = arith.constant 5.000000e-01 : f32
    %422 = vector.broadcast %cst_135 : f32 to vector<2x32xf32>
    %423 = arith.addf %421, %422 : vector<2x32xf32>
    %424 = arith.mulf %412, %371 : vector<2x32xf32>
    %425 = arith.mulf %417, %418 : vector<2x32xf32>
    %426 = arith.addf %424, %425 : vector<2x32xf32>
    %427 = math.tanh %426 : vector<2x32xf32>
    %428 = arith.mulf %423, %427 : vector<2x32xf32>
    %429 = arith.truncf %428 : vector<2x32xf32> to vector<2x32xbf16>
    %cst_136 = arith.constant dense<0.000000e+00> : vector<2x128xf32>
    %430 = tpu.matmul %429, %1, %cst_136 {dimension_numbers = #tpu.dot_dimension_numbers<[1], [0], [0], [1], [0, 0, 1, 1], [], []>} : vector<2x32xbf16>, vector<32x128xbf16>, vector<2x128xf32> -> vector<2x128xf32>
    %431 = vector.broadcast %5 : vector<1x128xf32> to vector<2x128xf32>
    %432 = arith.addf %430, %431 : vector<2x128xf32>
    %433 = arith.truncf %402 : vector<2x32xf32> to vector<2x32xbf16>
    %cst_137 = arith.constant dense<0.000000e+00> : vector<2x128xf32>
    %434 = tpu.matmul %433, %3, %cst_137 {dimension_numbers = #tpu.dot_dimension_numbers<[1], [0], [0], [1], [0, 0, 1, 1], [], []>} : vector<2x32xbf16>, vector<32x128xbf16>, vector<2x128xf32> -> vector<2x128xf32>
    %435 = arith.addf %432, %434 : vector<2x128xf32>
    %436 = math.tanh %435 : vector<2x128xf32>
    %437 = vector.extract_strided_slice %436 {offsets = [0, 0], sizes = [2, 32], strides = [1, 1]} : vector<2x128xf32> to vector<2x32xf32>
    %cst_138 = arith.constant 5.000000e-01 : f32
    %438 = vector.broadcast %cst_138 : f32 to vector<2x32xf32>
    %439 = arith.mulf %437, %438 : vector<2x32xf32>
    %cst_139 = arith.constant 5.000000e-01 : f32
    %440 = vector.broadcast %cst_139 : f32 to vector<2x32xf32>
    %441 = arith.addf %439, %440 : vector<2x32xf32>
    %442 = vector.extract_strided_slice %436 {offsets = [0, 32], sizes = [2, 32], strides = [1, 1]} : vector<2x128xf32> to vector<2x32xf32>
    %cst_140 = arith.constant 5.000000e-01 : f32
    %443 = vector.broadcast %cst_140 : f32 to vector<2x32xf32>
    %444 = arith.mulf %442, %443 : vector<2x32xf32>
    %cst_141 = arith.constant 5.000000e-01 : f32
    %445 = vector.broadcast %cst_141 : f32 to vector<2x32xf32>
    %446 = arith.addf %444, %445 : vector<2x32xf32>
    %447 = vector.extract_strided_slice %436 {offsets = [0, 64], sizes = [2, 32], strides = [1, 1]} : vector<2x128xf32> to vector<2x32xf32>
    %448 = vector.extract_strided_slice %436 {offsets = [0, 96], sizes = [2, 32], strides = [1, 1]} : vector<2x128xf32> to vector<2x32xf32>
    %cst_142 = arith.constant 5.000000e-01 : f32
    %449 = vector.broadcast %cst_142 : f32 to vector<2x32xf32>
    %450 = arith.mulf %448, %449 : vector<2x32xf32>
    %cst_143 = arith.constant 5.000000e-01 : f32
    %451 = vector.broadcast %cst_143 : f32 to vector<2x32xf32>
    %452 = arith.addf %450, %451 : vector<2x32xf32>
    %453 = arith.mulf %441, %400 : vector<2x32xf32>
    %454 = arith.mulf %446, %447 : vector<2x32xf32>
    %455 = arith.addf %453, %454 : vector<2x32xf32>
    %456 = math.tanh %455 : vector<2x32xf32>
    %457 = arith.mulf %452, %456 : vector<2x32xf32>
    %c0_144 = arith.constant 0 : index
    %c0_145 = arith.constant 0 : index
    %c0_146 = arith.constant 0 : index
    %458 = vector.load %arg14[%c0_144, %c0_145, %c0_146] : memref<2x2x32xf32, #tpu.memory_space<vmem>>, vector<1x2x32xf32>
    %459 = vector.shape_cast %458 : vector<1x2x32xf32> to vector<2x32xf32>
    %460 = vector.shape_cast %428 : vector<2x32xf32> to vector<1x2x32xf32>
    tpu.vector_store %arg14[%c0_144, %c0_145, %c0_146], %460 {strides = array<i32>} : memref<2x2x32xf32, #tpu.memory_space<vmem>>, vector<1x2x32xf32>,
    %c0_147 = arith.constant 0 : index
    %c0_148 = arith.constant 0 : index
    %c0_149 = arith.constant 0 : index
    %461 = vector.load %arg15[%c0_147, %c0_148, %c0_149] : memref<2x2x32xf32, #tpu.memory_space<vmem>>, vector<1x2x32xf32>
    %462 = vector.shape_cast %461 : vector<1x2x32xf32> to vector<2x32xf32>
    %463 = vector.shape_cast %426 : vector<2x32xf32> to vector<1x2x32xf32>
    tpu.vector_store %arg15[%c0_147, %c0_148, %c0_149], %463 {strides = array<i32>} : memref<2x2x32xf32, #tpu.memory_space<vmem>>, vector<1x2x32xf32>,
    %c1_150 = arith.constant 1 : index
    %c0_151 = arith.constant 0 : index
    %c0_152 = arith.constant 0 : index
    %464 = vector.load %arg14[%c1_150, %c0_151, %c0_152] : memref<2x2x32xf32, #tpu.memory_space<vmem>>, vector<1x2x32xf32>
    %465 = vector.shape_cast %464 : vector<1x2x32xf32> to vector<2x32xf32>
    %466 = vector.shape_cast %457 : vector<2x32xf32> to vector<1x2x32xf32>
    tpu.vector_store %arg14[%c1_150, %c0_151, %c0_152], %466 {strides = array<i32>} : memref<2x2x32xf32, #tpu.memory_space<vmem>>, vector<1x2x32xf32>,
    %c1_153 = arith.constant 1 : index
    %c0_154 = arith.constant 0 : index
    %c0_155 = arith.constant 0 : index
    %467 = vector.load %arg15[%c1_153, %c0_154, %c0_155] : memref<2x2x32xf32, #tpu.memory_space<vmem>>, vector<1x2x32xf32>
    %468 = vector.shape_cast %467 : vector<1x2x32xf32> to vector<2x32xf32>
    %469 = vector.shape_cast %455 : vector<2x32xf32> to vector<1x2x32xf32>
    tpu.vector_store %arg15[%c1_153, %c0_154, %c0_155], %469 {strides = array<i32>} : memref<2x2x32xf32, #tpu.memory_space<vmem>>, vector<1x2x32xf32>,
    %c0_156 = arith.constant 0 : index
    %c0_157 = arith.constant 0 : index
    %470 = vector.load %arg9[%c0_156, %c0_157] : memref<32x32xf32, #tpu.memory_space<vmem>>, vector<32x32xf32>
    %cst_158 = arith.constant dense<0.000000e+00> : vector<2x32xf32>
    %471 = tpu.matmul %457, %470, %cst_158 {dimension_numbers = #tpu.dot_dimension_numbers<[1], [0], [0], [1], [0, 0, 1, 1], [], []>} : vector<2x32xf32>, vector<32x32xf32>, vector<2x32xf32> -> vector<2x32xf32>
    %c0_159 = arith.constant 0 : index
    %c0_160 = arith.constant 0 : index
    %472 = vector.load %arg10[%c0_159, %c0_160] : memref<1x32xf32, #tpu.memory_space<vmem>>, vector<1x32xf32>
    %473 = vector.broadcast %472 : vector<1x32xf32> to vector<2x32xf32>
    %474 = arith.addf %471, %473 : vector<2x32xf32>
    %c0_161 = arith.constant 0 : index
    %c0_162 = arith.constant 0 : index
    %475 = vector.load %arg11[%c0_161, %c0_162] : memref<32x4xf32, #tpu.memory_space<vmem>>, vector<32x4xf32>
    %cst_163 = arith.constant dense<0.000000e+00> : vector<2x4xf32>
    %476 = tpu.matmul %474, %475, %cst_163 {dimension_numbers = #tpu.dot_dimension_numbers<[1], [0], [0], [1], [0, 0, 1, 1], [], []>} : vector<2x32xf32>, vector<32x4xf32>, vector<2x4xf32> -> vector<2x4xf32>
    %c0_164 = arith.constant 0 : index
    %c0_165 = arith.constant 0 : index
    %477 = vector.load %arg12[%c0_164, %c0_165] : memref<1x4xf32, #tpu.memory_space<vmem>>, vector<1x4xf32>
    %478 = vector.broadcast %477 : vector<1x4xf32> to vector<2x4xf32>
    %479 = arith.addf %476, %478 : vector<2x4xf32>
    %c0_166 = arith.constant 0 : index
    %c0_167 = arith.constant 0 : index
    %480 = vector.load %arg13[%c0_166, %c0_167] : memref<2x4xf32, #tpu.memory_space<vmem>>, vector<2x4xf32>
    tpu.vector_store %arg13[%c0_166, %c0_167], %479 {strides = array<i32>} : memref<2x4xf32, #tpu.memory_space<vmem>>, vector<2x4xf32>,
    return
  }
}

</mosaic_0001>

<llo_original>
// kernel: tpu_custom_call.1
$region0: #{tpu_custom_call.1}
  #allocation0 [shape = 'u32[]', space=smem, size = 0x4, offset = 0x4, fixed_abs, tag = 'smem constant byte address 0x4 - core index']
  #allocation1 [shape = 'u32[144,128]{1,0:T(1,128)}', space=vmem, size = 0x12000, scoped, tag = 'internal scratch']
  %s0 = inlined_call_operand.vmem [shape: bf16[16,16], index: 0, kind: input, shape index: {}]
  %s1 = inlined_call_operand.vmem [shape: f32[2,2,32], index: 1, kind: input, shape index: {}]
  %s2 = inlined_call_operand.hbm [shape: f32[2,2,32], index: 2, kind: input, shape index: {}]
  %s3 = inlined_call_operand.hbm [shape: bf16[16,128], index: 3, kind: input, shape index: {}]
  %s4 = inlined_call_operand.vmem [shape: bf16[32,128], index: 4, kind: input, shape index: {}]
  %s5 = inlined_call_operand.vmem [shape: f32[1,128], index: 5, kind: input, shape index: {}]
  %s6 = inlined_call_operand.hbm [shape: bf16[32,128], index: 6, kind: input, shape index: {}]
  %s7 = inlined_call_operand.hbm [shape: bf16[32,128], index: 7, kind: input, shape index: {}]
  %s8 = inlined_call_operand.vmem [shape: f32[1,128], index: 8, kind: input, shape index: {}]
  %s9 = inlined_call_operand.vmem [shape: f32[32,32], index: 9, kind: input, shape index: {}]
  %s10 = inlined_call_operand.vmem [shape: f32[1,32], index: 10, kind: input, shape index: {}]
  %s11 = inlined_call_operand.vmem [shape: f32[32,4], index: 11, kind: input, shape index: {}]
  %s12 = inlined_call_operand.vmem [shape: f32[1,4], index: 12, kind: input, shape index: {}]
  %s13 = inlined_call_operand.hbm [shape: f32[2,4], index: 13, kind: output, shape index: {0}]
  %s14 = inlined_call_operand.hbm [shape: f32[2,2,32], index: 14, kind: output, shape index: {1}]
  %s15 = inlined_call_operand.hbm [shape: f32[2,2,32], index: 15, kind: output, shape index: {2}]
  %16 = xla_tuple %s13, %s14, %s15
  %s17 = sld [smem:[#allocation0]]
  $region94: #{tpu_custom_call.1} parent=0
    _
  %s19 = ssub.s32 1, %s17
  %s20 = scalar_select 0, %s19, %s17
  $region1: #{tpu_custom_call.1} parent=0
    #allocation2 [shape = 'u8[2048]{0}', space=vmem, size = 0x800, scoped, tag = 'input window, operand 2, single buffered']
    #allocation3 [shape = 's32[1]{0}', space=sflag, size = 0x4, scoped, tag = 'scoped memory for tpu_custom_call.1']
    #allocation4 [shape = 's32[1]{0}', space=sflag, size = 0x4, scoped, tag = 'scoped memory for tpu_custom_call.1']
    #allocation5 [shape = 'u8[4096]{0}', space=vmem, size = 0x1000, scoped, tag = 'input window, operand 3, single buffered']
    #allocation6 [shape = 's32[1]{0}', space=sflag, size = 0x4, scoped, tag = 'scoped memory for tpu_custom_call.1']
    #allocation7 [shape = 'u8[8192]{0}', space=vmem, size = 0x2000, scoped, tag = 'input window, operand 6, single buffered']
    #allocation8 [shape = 'u8[8192]{0}', space=vmem, size = 0x2000, scoped, tag = 'input window, operand 7, single buffered']
    #allocation9 [shape = 's32[1]{0}', space=sflag, size = 0x4, scoped, tag = 'scoped memory for tpu_custom_call.1']
    #allocation10 [shape = 'u8[1024]{0}', space=vmem, size = 0x400, scoped, tag = 'output window, operand 0, single buffered']
    #allocation11 [shape = 'u8[2048]{0}', space=vmem, size = 0x800, scoped, tag = 'output window, operand 1, single buffered']
    #allocation12 [shape = 's32[1]{0}', space=sflag, size = 0x4, scoped, tag = 'scoped memory for tpu_custom_call.1']
    #allocation13 [shape = 'u8[2048]{0}', space=vmem, size = 0x800, scoped, tag = 'output window, operand 2, single buffered']
    %21 = vsyncpa [#allocation3], 0
    %22 = vsyncpa [#allocation6], 0
    %23 = vsyncpa [#allocation9], 0
    %24 = vsyncpa [#allocation4], 0
    %25 = vsyncpa [#allocation12], 0
    // Predicated region
    $region2: #{tpu_custom_call.1} parent=1 // pred_check
      _
    $region3: #{tpu_custom_call.1} parent=1 // pred_check_branch
      %27 = sbr.rel (0) target = $region5
    $region4: #{tpu_custom_call.1} parent=1 // pred_region
      _
    $region5: #{tpu_custom_call.1} parent=1 // pred_fallthru
      _
    // Predicated region
    $region6: #{tpu_custom_call.1} parent=1 // pred_check
      _
    $region7: #{tpu_custom_call.1} parent=1 // pred_check_branch
      %29 = sbr.rel (0) target = $region9
    $region8: #{tpu_custom_call.1} parent=1 // pred_region
      _
    $region9: #{tpu_custom_call.1} parent=1 // pred_fallthru
      _
    // Predicated region
    $region10: #{tpu_custom_call.1} parent=1 // pred_check
      _
    $region11: #{tpu_custom_call.1} parent=1 // pred_check_branch
      %31 = sbr.rel (0) target = $region13
    $region12: #{tpu_custom_call.1} parent=1 // pred_region
      %s33 = ssub.s32 64, 64
      %34 = vsyncadd [#allocation3], %s33
      %s35 = sshll.u32 [#allocation2], 4
      %s36 = int_to_ptr.vmem [resolvable:$true] %s35
      %41 = dma.hbm_to_vmem [thread:$0]  %s2, 64, %s36, [#allocation3], 32, 32, 2
    $region13: #{tpu_custom_call.1} parent=1 // pred_fallthru
      _
    // Predicated region
    $region14: #{tpu_custom_call.1} parent=1 // pred_check
      _
    $region15: #{tpu_custom_call.1} parent=1 // pred_check_branch
      %43 = sbr.rel (0) target = $region17
    $region16: #{tpu_custom_call.1} parent=1 // pred_region
      %s45 = ssub.s32 128, 128
      %46 = vsyncadd [#allocation6], %s45
      %s47 = sshll.u32 [#allocation5], 4
      %s48 = int_to_ptr.vmem [resolvable:$true] %s47
      %53 = dma.hbm_to_vmem [thread:$0]  %s3, 128, %s48, [#allocation6], 64, 64, 4
    $region17: #{tpu_custom_call.1} parent=1 // pred_fallthru
      _
    // Predicated region
    $region18: #{tpu_custom_call.1} parent=1 // pred_check
      _
    $region19: #{tpu_custom_call.1} parent=1 // pred_check_branch
      %55 = sbr.rel (0) target = $region21
    $region20: #{tpu_custom_call.1} parent=1 // pred_region
      _
    $region21: #{tpu_custom_call.1} parent=1 // pred_fallthru
      _
    // Predicated region
    $region22: #{tpu_custom_call.1} parent=1 // pred_check
      _
    $region23: #{tpu_custom_call.1} parent=1 // pred_check_branch
      %57 = sbr.rel (0) target = $region25
    $region24: #{tpu_custom_call.1} parent=1 // pred_region
      _
    $region25: #{tpu_custom_call.1} parent=1 // pred_fallthru
      _
    // Predicated region
    $region26: #{tpu_custom_call.1} parent=1 // pred_check
      _
    $region27: #{tpu_custom_call.1} parent=1 // pred_check_branch
      %59 = sbr.rel (0) target = $region29
    $region28: #{tpu_custom_call.1} parent=1 // pred_region
      %s61 = ssub.s32 256, 256
      %62 = vsyncadd [#allocation6], %s61
      %s63 = sshll.u32 [#allocation7], 4
      %s64 = int_to_ptr.vmem [resolvable:$true] %s63
      %69 = dma.hbm_to_vmem [thread:$0]  %s6, 256, %s64, [#allocation6], 64, 64, 4
    $region29: #{tpu_custom_call.1} parent=1 // pred_fallthru
      _
    // Predicated region
    $region30: #{tpu_custom_call.1} parent=1 // pred_check
      _
    $region31: #{tpu_custom_call.1} parent=1 // pred_check_branch
      %71 = sbr.rel (0) target = $region33
    $region32: #{tpu_custom_call.1} parent=1 // pred_region
      %s73 = ssub.s32 256, 256
      %74 = vsyncadd [#allocation9], %s73
      %s75 = sshll.u32 [#allocation8], 4
      %s76 = int_to_ptr.vmem [resolvable:$true] %s75
      %81 = dma.hbm_to_vmem [thread:$0]  %s7, 256, %s76, [#allocation9], 64, 64, 4
    $region33: #{tpu_custom_call.1} parent=1 // pred_fallthru
      _
    // Predicated region
    $region34: #{tpu_custom_call.1} parent=1 // pred_check
      _
    $region35: #{tpu_custom_call.1} parent=1 // pred_check_branch
      %83 = sbr.rel (0) target = $region37
    $region36: #{tpu_custom_call.1} parent=1 // pred_region
      _
    $region37: #{tpu_custom_call.1} parent=1 // pred_fallthru
      _
    // Predicated region
    $region38: #{tpu_custom_call.1} parent=1 // pred_check
      _
    $region39: #{tpu_custom_call.1} parent=1 // pred_check_branch
      %85 = sbr.rel (0) target = $region41
    $region40: #{tpu_custom_call.1} parent=1 // pred_region
      _
    $region41: #{tpu_custom_call.1} parent=1 // pred_fallthru
      _
    // Predicated region
    $region42: #{tpu_custom_call.1} parent=1 // pred_check
      _
    $region43: #{tpu_custom_call.1} parent=1 // pred_check_branch
      %87 = sbr.rel (0) target = $region45
    $region44: #{tpu_custom_call.1} parent=1 // pred_region
      _
    $region45: #{tpu_custom_call.1} parent=1 // pred_fallthru
      _
    // Predicated region
    $region46: #{tpu_custom_call.1} parent=1 // pred_check
      _
    $region47: #{tpu_custom_call.1} parent=1 // pred_check_branch
      %89 = sbr.rel (0) target = $region49
    $region48: #{tpu_custom_call.1} parent=1 // pred_region
      _
    $region49: #{tpu_custom_call.1} parent=1 // pred_fallthru
      _
    // Predicated region
    $region50: #{tpu_custom_call.1} parent=1 // pred_check
      _
    $region51: #{tpu_custom_call.1} parent=1 // pred_check_branch
      %91 = sbr.rel (0) target = $region53
    $region52: #{tpu_custom_call.1} parent=1 // pred_region
      _
    $region53: #{tpu_custom_call.1} parent=1 // pred_fallthru
      _
    // Predicated region
    $region54: #{tpu_custom_call.1} parent=1 // pred_check
      _
    $region55: #{tpu_custom_call.1} parent=1 // pred_check_branch
      %93 = sbr.rel (0) target = $region57
    $region56: #{tpu_custom_call.1} parent=1 // pred_region
      %94 = dma.done [#allocation3], 64
    $region57: #{tpu_custom_call.1} parent=1 // pred_fallthru
      _
    // Predicated region
    $region58: #{tpu_custom_call.1} parent=1 // pred_check
      _
    $region59: #{tpu_custom_call.1} parent=1 // pred_check_branch
      %96 = sbr.rel (0) target = $region61
    $region60: #{tpu_custom_call.1} parent=1 // pred_region
      %97 = dma.done [#allocation6], 128
    $region61: #{tpu_custom_call.1} parent=1 // pred_fallthru
      _
    // Predicated region
    $region62: #{tpu_custom_call.1} parent=1 // pred_check
      _
    $region63: #{tpu_custom_call.1} parent=1 // pred_check_branch
      %99 = sbr.rel (0) target = $region65
    $region64: #{tpu_custom_call.1} parent=1 // pred_region
      %100 = dma.done [#allocation6], 256
    $region65: #{tpu_custom_call.1} parent=1 // pred_fallthru
      _
    // Predicated region
    $region66: #{tpu_custom_call.1} parent=1 // pred_check
      _
    $region67: #{tpu_custom_call.1} parent=1 // pred_check_branch
      %102 = sbr.rel (0) target = $region69
    $region68: #{tpu_custom_call.1} parent=1 // pred_region
      %103 = dma.done [#allocation9], 256
    $region69: #{tpu_custom_call.1} parent=1 // pred_fallthru
      _
    %v105 = vld [vmem:[#allocation5] sm:$0xf]
    %v106 = vld [vmem:[#allocation5 + $0x4] sm:$0xf]
    %v107 = vld [vmem:[#allocation7] sm:$0xf]
    %v108 = vld [vmem:[#allocation7 + $0x4] sm:$0xf]
    %v109 = vld [vmem:[#allocation7 + $0x8] sm:$0xf]
    %v110 = vld [vmem:[#allocation7 + $0xc] sm:$0xf]
    %v111 = vld [vmem:[%s4] sm:$0xf]
    %v112 = vld [vmem:[%s4 + $0x4] sm:$0xf]
    %v113 = vld [vmem:[%s4 + $0x8] sm:$0xf]
    %v114 = vld [vmem:[%s4 + $0xc] sm:$0xf]
    %v115 = vld [vmem:[#allocation8] sm:$0xf]
    %v116 = vld [vmem:[#allocation8 + $0x4] sm:$0xf]
    %v117 = vld [vmem:[#allocation8 + $0x8] sm:$0xf]
    %v118 = vld [vmem:[#allocation8 + $0xc] sm:$0xf]
    %v119 = vld [vmem:[%s5] sm:$0x1]
    %v120 = vld [vmem:[%s8] sm:$0x1]
    %v121 = vld [vmem:[%s0] sm:$0xf]
    %v122 = vld [vmem:[%s0 + $0x4] sm:$0xf]
    %v124 = vlaneseq
    %v125 = vshrl.u32 %v124, 7
    %v126 = vsub.s32 0, %v125
    %v127 = vrot.slane %v119, %v126
    %v131 = vunpack.c.l.b16 %v121
    %v132 = vunpack.c.l.b16 %v122
    %v133 = vpack.c.b16 %v132, %v131
    %v136 = vunpack.c.l.b16 %v105
    %v137 = vunpack.c.l.b16 %v106
    %v138 = vpack.c.b16 %v137, %v136
    %vm140 = vcmask 130048
    %v142 = vsel %vm140, %v133, 0
    %144 = vmatprep.subr.bf16.mxu0 0
    %145 = vmatpush1.bf16.msra.mxu0 %v138
    %146 = vmatprep.subr.bf16.mxu0 0
    %147 = vmatpush1.bf16.msra.mxu0 0
    %148 = vmatprep.subr.bf16.mxu0 0
    %149 = vmatpush1.bf16.msra.mxu0 0
    %150 = vmatprep.subr.bf16.mxu0 0
    %151 = vmatpush1.bf16.msra.mxu0 0
    %152 = vmatprep.subr.bf16.mxu0 0
    %153 = vmatpush1.bf16.msra.mxu0 0
    %154 = vmatprep.subr.bf16.mxu0 0
    %155 = vmatpush1.bf16.msra.mxu0 0
    %156 = vmatprep.subr.bf16.mxu0 0
    %157 = vmatpush1.bf16.msra.mxu0 0
    %158 = vmatprep.subr.bf16.mxu0 0
    %159 = vmatpush1.bf16.msra.mxu0 0
    %160 = vmatprep.subr.bf16.mxu0 0
    %161 = vmatpush1.bf16.msra.mxu0 0
    %162 = vmatprep.subr.bf16.mxu0 0
    %163 = vmatpush1.bf16.msra.mxu0 0
    %164 = vmatprep.subr.bf16.mxu0 0
    %165 = vmatpush1.bf16.msra.mxu0 0
    %166 = vmatprep.subr.bf16.mxu0 0
    %167 = vmatpush1.bf16.msra.mxu0 0
    %168 = vmatprep.subr.bf16.mxu0 0
    %169 = vmatpush1.bf16.msra.mxu0 0
    %170 = vmatprep.subr.bf16.mxu0 0
    %171 = vmatpush1.bf16.msra.mxu0 0
    %172 = vmatprep.subr.bf16.mxu0 0
    %173 = vmatpush1.bf16.msra.mxu0 0
    %174 = vmatprep.subr.bf16.mxu0 0
    %175 = vmatpush1.bf16.msra.mxu0 0
    %176 = vmatprep.mubr.bf16.mxu0 0
    %177 = vmatmul.mubr.bf16.gmra.mrb[0].mxu0 %v142
    %v178 = vpop.f32.mrb[0].mxu0
    %v179 = vadd.f32 %v127, %v178
    %v180 = vpop.f32.mrb[0].mxu0
    %v181 = vpop.f32.mrb[0].mxu0
    %v182 = vadd.f32 %v127, %v181
    %v183 = vpop.f32.mrb[0].mxu0
    %184 = vdwg.mxu0
    %v185 = vld [vmem:[%s1] sm:$0x3]
    %s186 = scalar_lea.vmem %s1, 2
    %v187 = vld [vmem:[%s186] sm:$0x3]
    %v188 = vld [vmem:[#allocation2] sm:$0x3]
    %s189 = scalar_lea.vmem [#allocation2], 2
    %v190 = vld [vmem:[%s189] sm:$0x3]
    %v191 = vpack.c.bf16 %v185, %v185
    %v196 = vunpack.c.l.b16 %v111
    %v197 = vunpack.c.l.b16 %v112
    %v198 = vunpack.c.l.b16 %v113
    %v199 = vunpack.c.l.b16 %v114
    %v200 = vpack.c.b16 %v197, %v196
    %v201 = vpack.c.b16 %v199, %v198
    %vm204 = vcmask 261120
    %v206 = vsel %vm204, %v191, 0
    %208 = vmatprep.subr.bf16.mxu0 0
    %209 = vmatpush1.bf16.msra.mxu0 %v200
    %210 = vmatprep.subr.bf16.mxu0 0
    %211 = vmatpush1.bf16.msra.mxu0 %v201
    %212 = vmatprep.subr.bf16.mxu0 0
    %213 = vmatpush1.bf16.msra.mxu0 0
    %214 = vmatprep.subr.bf16.mxu0 0
    %215 = vmatpush1.bf16.msra.mxu0 0
    %216 = vmatprep.subr.bf16.mxu0 0
    %217 = vmatpush1.bf16.msra.mxu0 0
    %218 = vmatprep.subr.bf16.mxu0 0
    %219 = vmatpush1.bf16.msra.mxu0 0
    %220 = vmatprep.subr.bf16.mxu0 0
    %221 = vmatpush1.bf16.msra.mxu0 0
    %222 = vmatprep.subr.bf16.mxu0 0
    %223 = vmatpush1.bf16.msra.mxu0 0
    %224 = vmatprep.subr.bf16.mxu0 0
    %225 = vmatpush1.bf16.msra.mxu0 0
    %226 = vmatprep.subr.bf16.mxu0 0
    %227 = vmatpush1.bf16.msra.mxu0 0
    %228 = vmatprep.subr.bf16.mxu0 0
    %229 = vmatpush1.bf16.msra.mxu0 0
    %230 = vmatprep.subr.bf16.mxu0 0
    %231 = vmatpush1.bf16.msra.mxu0 0
    %232 = vmatprep.subr.bf16.mxu0 0
    %233 = vmatpush1.bf16.msra.mxu0 0
    %234 = vmatprep.subr.bf16.mxu0 0
    %235 = vmatpush1.bf16.msra.mxu0 0
    %236 = vmatprep.subr.bf16.mxu0 0
    %237 = vmatpush1.bf16.msra.mxu0 0
    %238 = vmatprep.subr.bf16.mxu0 0
    %239 = vmatpush1.bf16.msra.mxu0 0
    %240 = vmatprep.mubr.bf16.mxu0 0
    %241 = vmatmul.mubr.bf16.gmra.mrb[0].mxu0 %v206
    %v242 = vpop.f32.mrb[0].mxu0
    %v243 = vadd.f32 0.0, %v242
    %v244 = vpop.f32.mrb[0].mxu0
    %v245 = vpop.f32.mrb[0].mxu0
    %v246 = vpop.f32.mrb[0].mxu0
    %247 = vdwg.mxu0
    %v248 = vadd.f32 %v179, %v243
    %v249 = vtanh.pop %v248
    %v250 = vmul.f32 %v249, 0.5
    %v251 = vadd.f32 %v250, 0.5
    %v252 = vmul.f32 %v251, %v188
    %254 = vrot.lane.b32.xlu0 %v249, 96
    %v255 = vpop.permute.xlu0 %254
    %v257 = vmul.f32 %v251, %v255
    %259 = vrot.lane.b32.xlu0 %v257, 96
    %v260 = vpop.permute.xlu0 %259
    %v262 = vadd.f32 %v252, %v260
    %v263 = vtanh.pop %v262
    %265 = vrot.lane.b32.xlu0 %v263, 96
    %v266 = vpop.permute.xlu0 %265
    %v268 = vmul.f32 %v251, %v266
    %v269 = vpack.c.bf16 %v268, %v268
    %v271 = vlaneseq
    %v272 = vshrl.u32 %v271, 7
    %v273 = vsub.s32 0, %v272
    %v274 = vrot.slane %v120, %v273
    %277 = vrot.lane.b32.xlu0 %v269, 32
    %v278 = vpop.permute.xlu0 %277
    %v283 = vunpack.c.l.b16 %v107
    %v284 = vunpack.c.l.b16 %v108
    %v285 = vunpack.c.l.b16 %v109
    %v286 = vunpack.c.l.b16 %v110
    %v287 = vpack.c.b16 %v284, %v283
    %v288 = vpack.c.b16 %v286, %v285
    %v292 = vsel %vm204, %v278, 0
    %294 = vmatprep.subr.bf16.mxu0 0
    %295 = vmatpush1.bf16.msra.mxu0 %v287
    %296 = vmatprep.subr.bf16.mxu0 0
    %297 = vmatpush1.bf16.msra.mxu0 %v288
    %298 = vmatprep.subr.bf16.mxu0 0
    %299 = vmatpush1.bf16.msra.mxu0 0
    %300 = vmatprep.subr.bf16.mxu0 0
    %301 = vmatpush1.bf16.msra.mxu0 0
    %302 = vmatprep.subr.bf16.mxu0 0
    %303 = vmatpush1.bf16.msra.mxu0 0
    %304 = vmatprep.subr.bf16.mxu0 0
    %305 = vmatpush1.bf16.msra.mxu0 0
    %306 = vmatprep.subr.bf16.mxu0 0
    %307 = vmatpush1.bf16.msra.mxu0 0
    %308 = vmatprep.subr.bf16.mxu0 0
    %309 = vmatpush1.bf16.msra.mxu0 0
    %310 = vmatprep.subr.bf16.mxu0 0
    %311 = vmatpush1.bf16.msra.mxu0 0
    %312 = vmatprep.subr.bf16.mxu0 0
    %313 = vmatpush1.bf16.msra.mxu0 0
    %314 = vmatprep.subr.bf16.mxu0 0
    %315 = vmatpush1.bf16.msra.mxu0 0
    %316 = vmatprep.subr.bf16.mxu0 0
    %317 = vmatpush1.bf16.msra.mxu0 0
    %318 = vmatprep.subr.bf16.mxu0 0
    %319 = vmatpush1.bf16.msra.mxu0 0
    %320 = vmatprep.subr.bf16.mxu0 0
    %321 = vmatpush1.bf16.msra.mxu0 0
    %322 = vmatprep.subr.bf16.mxu0 0
    %323 = vmatpush1.bf16.msra.mxu0 0
    %324 = vmatprep.subr.bf16.mxu0 0
    %325 = vmatpush1.bf16.msra.mxu0 0
    %326 = vmatprep.mubr.bf16.mxu0 0
    %327 = vmatmul.mubr.bf16.gmra.mrb[0].mxu0 %v292
    %v328 = vpop.f32.mrb[0].mxu0
    %v329 = vadd.f32 %v274, %v328
    %v330 = vpop.f32.mrb[0].mxu0
    %v331 = vpop.f32.mrb[0].mxu0
    %v332 = vpop.f32.mrb[0].mxu0
    %333 = vdwg.mxu0
    %v334 = vpack.c.bf16 %v187, %v187
    %v339 = vunpack.c.l.b16 %v115
    %v340 = vunpack.c.l.b16 %v116
    %v341 = vunpack.c.l.b16 %v117
    %v342 = vunpack.c.l.b16 %v118
    %v343 = vpack.c.b16 %v340, %v339
    %v344 = vpack.c.b16 %v342, %v341
    %v348 = vsel %vm204, %v334, 0
    %350 = vmatprep.subr.bf16.mxu0 0
    %351 = vmatpush1.bf16.msra.mxu0 %v343
    %352 = vmatprep.subr.bf16.mxu0 0
    %353 = vmatpush1.bf16.msra.mxu0 %v344
    %354 = vmatprep.subr.bf16.mxu0 0
    %355 = vmatpush1.bf16.msra.mxu0 0
    %356 = vmatprep.subr.bf16.mxu0 0
    %357 = vmatpush1.bf16.msra.mxu0 0
    %358 = vmatprep.subr.bf16.mxu0 0
    %359 = vmatpush1.bf16.msra.mxu0 0
    %360 = vmatprep.subr.bf16.mxu0 0
    %361 = vmatpush1.bf16.msra.mxu0 0
    %362 = vmatprep.subr.bf16.mxu0 0
    %363 = vmatpush1.bf16.msra.mxu0 0
    %364 = vmatprep.subr.bf16.mxu0 0
    %365 = vmatpush1.bf16.msra.mxu0 0
    %366 = vmatprep.subr.bf16.mxu0 0
    %367 = vmatpush1.bf16.msra.mxu0 0
    %368 = vmatprep.subr.bf16.mxu0 0
    %369 = vmatpush1.bf16.msra.mxu0 0
    %370 = vmatprep.subr.bf16.mxu0 0
    %371 = vmatpush1.bf16.msra.mxu0 0
    %372 = vmatprep.subr.bf16.mxu0 0
    %373 = vmatpush1.bf16.msra.mxu0 0
    %374 = vmatprep.subr.bf16.mxu0 0
    %375 = vmatpush1.bf16.msra.mxu0 0
    %376 = vmatprep.subr.bf16.mxu0 0
    %377 = vmatpush1.bf16.msra.mxu0 0
    %378 = vmatprep.subr.bf16.mxu0 0
    %379 = vmatpush1.bf16.msra.mxu0 0
    %380 = vmatprep.subr.bf16.mxu0 0
    %381 = vmatpush1.bf16.msra.mxu0 0
    %382 = vmatprep.mubr.bf16.mxu0 0
    %383 = vmatmul.mubr.bf16.gmra.mrb[0].mxu0 %v348
    %v384 = vpop.f32.mrb[0].mxu0
    %v385 = vadd.f32 0.0, %v384
    %v386 = vpop.f32.mrb[0].mxu0
    %v387 = vpop.f32.mrb[0].mxu0
    %v388 = vpop.f32.mrb[0].mxu0
    %389 = vdwg.mxu0
    %v390 = vadd.f32 %v329, %v385
    %v391 = vtanh.pop %v390
    %v392 = vmul.f32 %v391, 0.5
    %v393 = vadd.f32 %v392, 0.5
    %v394 = vmul.f32 %v393, %v190
    %396 = vrot.lane.b32.xlu0 %v391, 96
    %v397 = vpop.permute.xlu0 %396
    %v399 = vmul.f32 %v393, %v397
    %401 = vrot.lane.b32.xlu0 %v399, 96
    %v402 = vpop.permute.xlu0 %401
    %v404 = vadd.f32 %v394, %v402
    %v405 = vtanh.pop %v404
    %407 = vrot.lane.b32.xlu0 %v405, 96
    %v408 = vpop.permute.xlu0 %407
    %v410 = vmul.f32 %v393, %v408
    %411 = vmatprep.subr.bf16.mxu0 0
    %412 = vmatpush1.bf16.msra.mxu0 %v200
    %413 = vmatprep.subr.bf16.mxu0 0
    %414 = vmatpush1.bf16.msra.mxu0 %v201
    %415 = vmatprep.subr.bf16.mxu0 0
    %416 = vmatpush1.bf16.msra.mxu0 0
    %417 = vmatprep.subr.bf16.mxu0 0
    %418 = vmatpush1.bf16.msra.mxu0 0
    %419 = vmatprep.subr.bf16.mxu0 0
    %420 = vmatpush1.bf16.msra.mxu0 0
    %421 = vmatprep.subr.bf16.mxu0 0
    %422 = vmatpush1.bf16.msra.mxu0 0
    %423 = vmatprep.subr.bf16.mxu0 0
    %424 = vmatpush1.bf16.msra.mxu0 0
    %425 = vmatprep.subr.bf16.mxu0 0
    %426 = vmatpush1.bf16.msra.mxu0 0
    %427 = vmatprep.subr.bf16.mxu0 0
    %428 = vmatpush1.bf16.msra.mxu0 0
    %429 = vmatprep.subr.bf16.mxu0 0
    %430 = vmatpush1.bf16.msra.mxu0 0
    %431 = vmatprep.subr.bf16.mxu0 0
    %432 = vmatpush1.bf16.msra.mxu0 0
    %433 = vmatprep.subr.bf16.mxu0 0
    %434 = vmatpush1.bf16.msra.mxu0 0
    %435 = vmatprep.subr.bf16.mxu0 0
    %436 = vmatpush1.bf16.msra.mxu0 0
    %437 = vmatprep.subr.bf16.mxu0 0
    %438 = vmatpush1.bf16.msra.mxu0 0
    %439 = vmatprep.subr.bf16.mxu0 0
    %440 = vmatpush1.bf16.msra.mxu0 0
    %441 = vmatprep.subr.bf16.mxu0 0
    %442 = vmatpush1.bf16.msra.mxu0 0
    %443 = vmatprep.mubr.bf16.mxu0 0
    %444 = vmatmul.mubr.bf16.gmra.mrb[0].mxu0 %v292
    %v445 = vpop.f32.mrb[0].mxu0
    %v446 = vadd.f32 0.0, %v445
    %v447 = vpop.f32.mrb[0].mxu0
    %v448 = vpop.f32.mrb[0].mxu0
    %v449 = vpop.f32.mrb[0].mxu0
    %450 = vdwg.mxu0
    %v452 = vrot.slane %v446, 6
    %v454 = vadd.f32 %v179, %v452
    %v455 = vtanh.pop %v454
    %v456 = vmul.f32 %v455, 0.5
    %v457 = vadd.f32 %v456, 0.5
    %v459 = vrot.slane %v262, 6
    %v461 = vmul.f32 %v457, %v459
    %463 = vrot.lane.b32.xlu0 %v455, 96
    %v464 = vpop.permute.xlu0 %463
    %v466 = vmul.f32 %v457, %v464
    %468 = vrot.lane.b32.xlu0 %v466, 96
    %v469 = vpop.permute.xlu0 %468
    %v471 = vadd.f32 %v461, %v469
    %v472 = vtanh.pop %v471
    %474 = vrot.lane.b32.xlu0 %v472, 96
    %v475 = vpop.permute.xlu0 %474
    %v477 = vmul.f32 %v457, %v475
    %v478 = vpack.c.bf16 %v477, %v477
    %v480 = vrot.slane %v478, 1
    %481 = vrot.lane.b32.xlu0 %v480, 32
    %v482 = vpop.permute.xlu0 %481
    %v484 = vsel %vm204, %v482, 0
    %486 = vmatprep.subr.bf16.mxu0 0
    %487 = vmatpush1.bf16.msra.mxu0 %v287
    %488 = vmatprep.subr.bf16.mxu0 0
    %489 = vmatpush1.bf16.msra.mxu0 %v288
    %490 = vmatprep.subr.bf16.mxu0 0
    %491 = vmatpush1.bf16.msra.mxu0 0
    %492 = vmatprep.subr.bf16.mxu0 0
    %493 = vmatpush1.bf16.msra.mxu0 0
    %494 = vmatprep.subr.bf16.mxu0 0
    %495 = vmatpush1.bf16.msra.mxu0 0
    %496 = vmatprep.subr.bf16.mxu0 0
    %497 = vmatpush1.bf16.msra.mxu0 0
    %498 = vmatprep.subr.bf16.mxu0 0
    %499 = vmatpush1.bf16.msra.mxu0 0
    %500 = vmatprep.subr.bf16.mxu0 0
    %501 = vmatpush1.bf16.msra.mxu0 0
    %502 = vmatprep.subr.bf16.mxu0 0
    %503 = vmatpush1.bf16.msra.mxu0 0
    %504 = vmatprep.subr.bf16.mxu0 0
    %505 = vmatpush1.bf16.msra.mxu0 0
    %506 = vmatprep.subr.bf16.mxu0 0
    %507 = vmatpush1.bf16.msra.mxu0 0
    %508 = vmatprep.subr.bf16.mxu0 0
    %509 = vmatpush1.bf16.msra.mxu0 0
    %510 = vmatprep.subr.bf16.mxu0 0
    %511 = vmatpush1.bf16.msra.mxu0 0
    %512 = vmatprep.subr.bf16.mxu0 0
    %513 = vmatpush1.bf16.msra.mxu0 0
    %514 = vmatprep.subr.bf16.mxu0 0
    %515 = vmatpush1.bf16.msra.mxu0 0
    %516 = vmatprep.subr.bf16.mxu0 0
    %517 = vmatpush1.bf16.msra.mxu0 0
    %518 = vmatprep.mubr.bf16.mxu0 0
    %519 = vmatmul.mubr.bf16.gmra.mrb[0].mxu0 %v484
    %v520 = vpop.f32.mrb[0].mxu0
    %v521 = vadd.f32 %v274, %v520
    %v522 = vpop.f32.mrb[0].mxu0
    %v523 = vpop.f32.mrb[0].mxu0
    %v524 = vpop.f32.mrb[0].mxu0
    %525 = vdwg.mxu0
    %v526 = vpack.c.bf16 %v410, %v410
    %528 = vrot.lane.b32.xlu0 %v526, 32
    %v529 = vpop.permute.xlu0 %528
    %v531 = vsel %vm204, %v529, 0
    %533 = vmatprep.subr.bf16.mxu0 0
    %534 = vmatpush1.bf16.msra.mxu0 %v343
    %535 = vmatprep.subr.bf16.mxu0 0
    %536 = vmatpush1.bf16.msra.mxu0 %v344
    %537 = vmatprep.subr.bf16.mxu0 0
    %538 = vmatpush1.bf16.msra.mxu0 0
    %539 = vmatprep.subr.bf16.mxu0 0
    %540 = vmatpush1.bf16.msra.mxu0 0
    %541 = vmatprep.subr.bf16.mxu0 0
    %542 = vmatpush1.bf16.msra.mxu0 0
    %543 = vmatprep.subr.bf16.mxu0 0
    %544 = vmatpush1.bf16.msra.mxu0 0
    %545 = vmatprep.subr.bf16.mxu0 0
    %546 = vmatpush1.bf16.msra.mxu0 0
    %547 = vmatprep.subr.bf16.mxu0 0
    %548 = vmatpush1.bf16.msra.mxu0 0
    %549 = vmatprep.subr.bf16.mxu0 0
    %550 = vmatpush1.bf16.msra.mxu0 0
    %551 = vmatprep.subr.bf16.mxu0 0
    %552 = vmatpush1.bf16.msra.mxu0 0
    %553 = vmatprep.subr.bf16.mxu0 0
    %554 = vmatpush1.bf16.msra.mxu0 0
    %555 = vmatprep.subr.bf16.mxu0 0
    %556 = vmatpush1.bf16.msra.mxu0 0
    %557 = vmatprep.subr.bf16.mxu0 0
    %558 = vmatpush1.bf16.msra.mxu0 0
    %559 = vmatprep.subr.bf16.mxu0 0
    %560 = vmatpush1.bf16.msra.mxu0 0
    %561 = vmatprep.subr.bf16.mxu0 0
    %562 = vmatpush1.bf16.msra.mxu0 0
    %563 = vmatprep.subr.bf16.mxu0 0
    %564 = vmatpush1.bf16.msra.mxu0 0
    %565 = vmatprep.mubr.bf16.mxu0 0
    %566 = vmatmul.mubr.bf16.gmra.mrb[0].mxu0 %v531
    %v567 = vpop.f32.mrb[0].mxu0
    %v568 = vadd.f32 0.0, %v567
    %v569 = vpop.f32.mrb[0].mxu0
    %v570 = vpop.f32.mrb[0].mxu0
    %v571 = vpop.f32.mrb[0].mxu0
    %572 = vdwg.mxu0
    %v573 = vadd.f32 %v521, %v568
    %v574 = vtanh.pop %v573
    %v575 = vmul.f32 %v574, 0.5
    %v576 = vadd.f32 %v575, 0.5
    %v577 = vmul.f32 %v576, %v404
    %579 = vrot.lane.b32.xlu0 %v574, 96
    %v580 = vpop.permute.xlu0 %579
    %v582 = vmul.f32 %v576, %v580
    %584 = vrot.lane.b32.xlu0 %v582, 96
    %v585 = vpop.permute.xlu0 %584
    %v587 = vadd.f32 %v577, %v585
    %v588 = vtanh.pop %v587
    %590 = vrot.lane.b32.xlu0 %v588, 96
    %v591 = vpop.permute.xlu0 %590
    %v593 = vmul.f32 %v576, %v591
    %594 = vmatprep.subr.bf16.mxu0 0
    %595 = vmatpush1.bf16.msra.mxu0 %v200
    %596 = vmatprep.subr.bf16.mxu0 0
    %597 = vmatpush1.bf16.msra.mxu0 %v201
    %598 = vmatprep.subr.bf16.mxu0 0
    %599 = vmatpush1.bf16.msra.mxu0 0
    %600 = vmatprep.subr.bf16.mxu0 0
    %601 = vmatpush1.bf16.msra.mxu0 0
    %602 = vmatprep.subr.bf16.mxu0 0
    %603 = vmatpush1.bf16.msra.mxu0 0
    %604 = vmatprep.subr.bf16.mxu0 0
    %605 = vmatpush1.bf16.msra.mxu0 0
    %606 = vmatprep.subr.bf16.mxu0 0
    %607 = vmatpush1.bf16.msra.mxu0 0
    %608 = vmatprep.subr.bf16.mxu0 0
    %609 = vmatpush1.bf16.msra.mxu0 0
    %610 = vmatprep.subr.bf16.mxu0 0
    %611 = vmatpush1.bf16.msra.mxu0 0
    %612 = vmatprep.subr.bf16.mxu0 0
    %613 = vmatpush1.bf16.msra.mxu0 0
    %614 = vmatprep.subr.bf16.mxu0 0
    %615 = vmatpush1.bf16.msra.mxu0 0
    %616 = vmatprep.subr.bf16.mxu0 0
    %617 = vmatpush1.bf16.msra.mxu0 0
    %618 = vmatprep.subr.bf16.mxu0 0
    %619 = vmatpush1.bf16.msra.mxu0 0
    %620 = vmatprep.subr.bf16.mxu0 0
    %621 = vmatpush1.bf16.msra.mxu0 0
    %622 = vmatprep.subr.bf16.mxu0 0
    %623 = vmatpush1.bf16.msra.mxu0 0
    %624 = vmatprep.subr.bf16.mxu0 0
    %625 = vmatpush1.bf16.msra.mxu0 0
    %626 = vmatprep.mubr.bf16.mxu0 0
    %627 = vmatmul.mubr.bf16.gmra.mrb[0].mxu0 %v484
    %v628 = vpop.f32.mrb[0].mxu0
    %v629 = vadd.f32 0.0, %v628
    %v630 = vpop.f32.mrb[0].mxu0
    %v631 = vpop.f32.mrb[0].mxu0
    %v632 = vpop.f32.mrb[0].mxu0
    %633 = vdwg.mxu0
    %v635 = vrot.slane %v629, 4
    %v637 = vadd.f32 %v179, %v635
    %v638 = vtanh.pop %v637
    %v639 = vmul.f32 %v638, 0.5
    %v640 = vadd.f32 %v639, 0.5
    %v642 = vrot.slane %v471, 6
    %v644 = vmul.f32 %v640, %v642
    %646 = vrot.lane.b32.xlu0 %v638, 96
    %v647 = vpop.permute.xlu0 %646
    %v649 = vmul.f32 %v640, %v647
    %651 = vrot.lane.b32.xlu0 %v649, 96
    %v652 = vpop.permute.xlu0 %651
    %v654 = vadd.f32 %v644, %v652
    %v655 = vtanh.pop %v654
    %657 = vrot.lane.b32.xlu0 %v655, 96
    %v658 = vpop.permute.xlu0 %657
    %v660 = vmul.f32 %v640, %v658
    %v661 = vpack.c.bf16 %v660, %v660
    %v663 = vrot.slane %v661, 2
    %664 = vrot.lane.b32.xlu0 %v663, 32
    %v665 = vpop.permute.xlu0 %664
    %v667 = vsel %vm204, %v665, 0
    %669 = vmatprep.subr.bf16.mxu0 0
    %670 = vmatpush1.bf16.msra.mxu0 %v287
    %671 = vmatprep.subr.bf16.mxu0 0
    %672 = vmatpush1.bf16.msra.mxu0 %v288
    %673 = vmatprep.subr.bf16.mxu0 0
    %674 = vmatpush1.bf16.msra.mxu0 0
    %675 = vmatprep.subr.bf16.mxu0 0
    %676 = vmatpush1.bf16.msra.mxu0 0
    %677 = vmatprep.subr.bf16.mxu0 0
    %678 = vmatpush1.bf16.msra.mxu0 0
    %679 = vmatprep.subr.bf16.mxu0 0
    %680 = vmatpush1.bf16.msra.mxu0 0
    %681 = vmatprep.subr.bf16.mxu0 0
    %682 = vmatpush1.bf16.msra.mxu0 0
    %683 = vmatprep.subr.bf16.mxu0 0
    %684 = vmatpush1.bf16.msra.mxu0 0
    %685 = vmatprep.subr.bf16.mxu0 0
    %686 = vmatpush1.bf16.msra.mxu0 0
    %687 = vmatprep.subr.bf16.mxu0 0
    %688 = vmatpush1.bf16.msra.mxu0 0
    %689 = vmatprep.subr.bf16.mxu0 0
    %690 = vmatpush1.bf16.msra.mxu0 0
    %691 = vmatprep.subr.bf16.mxu0 0
    %692 = vmatpush1.bf16.msra.mxu0 0
    %693 = vmatprep.subr.bf16.mxu0 0
    %694 = vmatpush1.bf16.msra.mxu0 0
    %695 = vmatprep.subr.bf16.mxu0 0
    %696 = vmatpush1.bf16.msra.mxu0 0
    %697 = vmatprep.subr.bf16.mxu0 0
    %698 = vmatpush1.bf16.msra.mxu0 0
    %699 = vmatprep.subr.bf16.mxu0 0
    %700 = vmatpush1.bf16.msra.mxu0 0
    %701 = vmatprep.mubr.bf16.mxu0 0
    %702 = vmatmul.mubr.bf16.gmra.mrb[0].mxu0 %v667
    %v703 = vpop.f32.mrb[0].mxu0
    %v704 = vadd.f32 %v274, %v703
    %v705 = vpop.f32.mrb[0].mxu0
    %v706 = vpop.f32.mrb[0].mxu0
    %v707 = vpop.f32.mrb[0].mxu0
    %708 = vdwg.mxu0
    %v709 = vpack.c.bf16 %v593, %v593
    %711 = vrot.lane.b32.xlu0 %v709, 32
    %v712 = vpop.permute.xlu0 %711
    %v714 = vsel %vm204, %v712, 0
    %716 = vmatprep.subr.bf16.mxu0 0
    %717 = vmatpush1.bf16.msra.mxu0 %v343
    %718 = vmatprep.subr.bf16.mxu0 0
    %719 = vmatpush1.bf16.msra.mxu0 %v344
    %720 = vmatprep.subr.bf16.mxu0 0
    %721 = vmatpush1.bf16.msra.mxu0 0
    %722 = vmatprep.subr.bf16.mxu0 0
    %723 = vmatpush1.bf16.msra.mxu0 0
    %724 = vmatprep.subr.bf16.mxu0 0
    %725 = vmatpush1.bf16.msra.mxu0 0
    %726 = vmatprep.subr.bf16.mxu0 0
    %727 = vmatpush1.bf16.msra.mxu0 0
    %728 = vmatprep.subr.bf16.mxu0 0
    %729 = vmatpush1.bf16.msra.mxu0 0
    %730 = vmatprep.subr.bf16.mxu0 0
    %731 = vmatpush1.bf16.msra.mxu0 0
    %732 = vmatprep.subr.bf16.mxu0 0
    %733 = vmatpush1.bf16.msra.mxu0 0
    %734 = vmatprep.subr.bf16.mxu0 0
    %735 = vmatpush1.bf16.msra.mxu0 0
    %736 = vmatprep.subr.bf16.mxu0 0
    %737 = vmatpush1.bf16.msra.mxu0 0
    %738 = vmatprep.subr.bf16.mxu0 0
    %739 = vmatpush1.bf16.msra.mxu0 0
    %740 = vmatprep.subr.bf16.mxu0 0
    %741 = vmatpush1.bf16.msra.mxu0 0
    %742 = vmatprep.subr.bf16.mxu0 0
    %743 = vmatpush1.bf16.msra.mxu0 0
    %744 = vmatprep.subr.bf16.mxu0 0
    %745 = vmatpush1.bf16.msra.mxu0 0
    %746 = vmatprep.subr.bf16.mxu0 0
    %747 = vmatpush1.bf16.msra.mxu0 0
    %748 = vmatprep.mubr.bf16.mxu0 0
    %749 = vmatmul.mubr.bf16.gmra.mrb[0].mxu0 %v714
    %v750 = vpop.f32.mrb[0].mxu0
    %v751 = vadd.f32 0.0, %v750
    %v752 = vpop.f32.mrb[0].mxu0
    %v753 = vpop.f32.mrb[0].mxu0
    %v754 = vpop.f32.mrb[0].mxu0
    %755 = vdwg.mxu0
    %v756 = vadd.f32 %v704, %v751
    %v757 = vtanh.pop %v756
    %v758 = vmul.f32 %v757, 0.5
    %v759 = vadd.f32 %v758, 0.5
    %v760 = vmul.f32 %v759, %v587
    %762 = vrot.lane.b32.xlu0 %v757, 96
    %v763 = vpop.permute.xlu0 %762
    %v765 = vmul.f32 %v759, %v763
    %767 = vrot.lane.b32.xlu0 %v765, 96
    %v768 = vpop.permute.xlu0 %767
    %v770 = vadd.f32 %v760, %v768
    %v771 = vtanh.pop %v770
    %773 = vrot.lane.b32.xlu0 %v771, 96
    %v774 = vpop.permute.xlu0 %773
    %v776 = vmul.f32 %v759, %v774
    %777 = vmatprep.subr.bf16.mxu0 0
    %778 = vmatpush1.bf16.msra.mxu0 %v200
    %779 = vmatprep.subr.bf16.mxu0 0
    %780 = vmatpush1.bf16.msra.mxu0 %v201
    %781 = vmatprep.subr.bf16.mxu0 0
    %782 = vmatpush1.bf16.msra.mxu0 0
    %783 = vmatprep.subr.bf16.mxu0 0
    %784 = vmatpush1.bf16.msra.mxu0 0
    %785 = vmatprep.subr.bf16.mxu0 0
    %786 = vmatpush1.bf16.msra.mxu0 0
    %787 = vmatprep.subr.bf16.mxu0 0
    %788 = vmatpush1.bf16.msra.mxu0 0
    %789 = vmatprep.subr.bf16.mxu0 0
    %790 = vmatpush1.bf16.msra.mxu0 0
    %791 = vmatprep.subr.bf16.mxu0 0
    %792 = vmatpush1.bf16.msra.mxu0 0
    %793 = vmatprep.subr.bf16.mxu0 0
    %794 = vmatpush1.bf16.msra.mxu0 0
    %795 = vmatprep.subr.bf16.mxu0 0
    %796 = vmatpush1.bf16.msra.mxu0 0
    %797 = vmatprep.subr.bf16.mxu0 0
    %798 = vmatpush1.bf16.msra.mxu0 0
    %799 = vmatprep.subr.bf16.mxu0 0
    %800 = vmatpush1.bf16.msra.mxu0 0
    %801 = vmatprep.subr.bf16.mxu0 0
    %802 = vmatpush1.bf16.msra.mxu0 0
    %803 = vmatprep.subr.bf16.mxu0 0
    %804 = vmatpush1.bf16.msra.mxu0 0
    %805 = vmatprep.subr.bf16.mxu0 0
    %806 = vmatpush1.bf16.msra.mxu0 0
    %807 = vmatprep.subr.bf16.mxu0 0
    %808 = vmatpush1.bf16.msra.mxu0 0
    %809 = vmatprep.mubr.bf16.mxu0 0
    %810 = vmatmul.mubr.bf16.gmra.mrb[0].mxu0 %v667
    %v811 = vpop.f32.mrb[0].mxu0
    %v812 = vadd.f32 0.0, %v811
    %v813 = vpop.f32.mrb[0].mxu0
    %v814 = vpop.f32.mrb[0].mxu0
    %v815 = vpop.f32.mrb[0].mxu0
    %816 = vdwg.mxu0
    %v818 = vrot.slane %v812, 2
    %v820 = vadd.f32 %v179, %v818
    %v821 = vtanh.pop %v820
    %v822 = vmul.f32 %v821, 0.5
    %v823 = vadd.f32 %v822, 0.5
    %v825 = vrot.slane %v654, 6
    %v827 = vmul.f32 %v823, %v825
    %829 = vrot.lane.b32.xlu0 %v821, 96
    %v830 = vpop.permute.xlu0 %829
    %v832 = vmul.f32 %v823, %v830
    %834 = vrot.lane.b32.xlu0 %v832, 96
    %v835 = vpop.permute.xlu0 %834
    %v837 = vadd.f32 %v827, %v835
    %v838 = vtanh.pop %v837
    %840 = vrot.lane.b32.xlu0 %v838, 96
    %v841 = vpop.permute.xlu0 %840
    %v843 = vmul.f32 %v823, %v841
    %v844 = vpack.c.bf16 %v843, %v843
    %v846 = vrot.slane %v844, 3
    %847 = vrot.lane.b32.xlu0 %v846, 32
    %v848 = vpop.permute.xlu0 %847
    %v850 = vsel %vm204, %v848, 0
    %852 = vmatprep.subr.bf16.mxu0 0
    %853 = vmatpush1.bf16.msra.mxu0 %v287
    %854 = vmatprep.subr.bf16.mxu0 0
    %855 = vmatpush1.bf16.msra.mxu0 %v288
    %856 = vmatprep.subr.bf16.mxu0 0
    %857 = vmatpush1.bf16.msra.mxu0 0
    %858 = vmatprep.subr.bf16.mxu0 0
    %859 = vmatpush1.bf16.msra.mxu0 0
    %860 = vmatprep.subr.bf16.mxu0 0
    %861 = vmatpush1.bf16.msra.mxu0 0
    %862 = vmatprep.subr.bf16.mxu0 0
    %863 = vmatpush1.bf16.msra.mxu0 0
    %864 = vmatprep.subr.bf16.mxu0 0
    %865 = vmatpush1.bf16.msra.mxu0 0
    %866 = vmatprep.subr.bf16.mxu0 0
    %867 = vmatpush1.bf16.msra.mxu0 0
    %868 = vmatprep.subr.bf16.mxu0 0
    %869 = vmatpush1.bf16.msra.mxu0 0
    %870 = vmatprep.subr.bf16.mxu0 0
    %871 = vmatpush1.bf16.msra.mxu0 0
    %872 = vmatprep.subr.bf16.mxu0 0
    %873 = vmatpush1.bf16.msra.mxu0 0
    %874 = vmatprep.subr.bf16.mxu0 0
    %875 = vmatpush1.bf16.msra.mxu0 0
    %876 = vmatprep.subr.bf16.mxu0 0
    %877 = vmatpush1.bf16.msra.mxu0 0
    %878 = vmatprep.subr.bf16.mxu0 0
    %879 = vmatpush1.bf16.msra.mxu0 0
    %880 = vmatprep.subr.bf16.mxu0 0
    %881 = vmatpush1.bf16.msra.mxu0 0
    %882 = vmatprep.subr.bf16.mxu0 0
    %883 = vmatpush1.bf16.msra.mxu0 0
    %884 = vmatprep.mubr.bf16.mxu0 0
    %885 = vmatmul.mubr.bf16.gmra.mrb[0].mxu0 %v850
    %v886 = vpop.f32.mrb[0].mxu0
    %v887 = vadd.f32 %v274, %v886
    %v888 = vpop.f32.mrb[0].mxu0
    %v889 = vpop.f32.mrb[0].mxu0
    %v890 = vpop.f32.mrb[0].mxu0
    %891 = vdwg.mxu0
    %v892 = vpack.c.bf16 %v776, %v776
    %894 = vrot.lane.b32.xlu0 %v892, 32
    %v895 = vpop.permute.xlu0 %894
    %v897 = vsel %vm204, %v895, 0
    %899 = vmatprep.subr.bf16.mxu0 0
    %900 = vmatpush1.bf16.msra.mxu0 %v343
    %901 = vmatprep.subr.bf16.mxu0 0
    %902 = vmatpush1.bf16.msra.mxu0 %v344
    %903 = vmatprep.subr.bf16.mxu0 0
    %904 = vmatpush1.bf16.msra.mxu0 0
    %905 = vmatprep.subr.bf16.mxu0 0
    %906 = vmatpush1.bf16.msra.mxu0 0
    %907 = vmatprep.subr.bf16.mxu0 0
    %908 = vmatpush1.bf16.msra.mxu0 0
    %909 = vmatprep.subr.bf16.mxu0 0
    %910 = vmatpush1.bf16.msra.mxu0 0
    %911 = vmatprep.subr.bf16.mxu0 0
    %912 = vmatpush1.bf16.msra.mxu0 0
    %913 = vmatprep.subr.bf16.mxu0 0
    %914 = vmatpush1.bf16.msra.mxu0 0
    %915 = vmatprep.subr.bf16.mxu0 0
    %916 = vmatpush1.bf16.msra.mxu0 0
    %917 = vmatprep.subr.bf16.mxu0 0
    %918 = vmatpush1.bf16.msra.mxu0 0
    %919 = vmatprep.subr.bf16.mxu0 0
    %920 = vmatpush1.bf16.msra.mxu0 0
    %921 = vmatprep.subr.bf16.mxu0 0
    %922 = vmatpush1.bf16.msra.mxu0 0
    %923 = vmatprep.subr.bf16.mxu0 0
    %924 = vmatpush1.bf16.msra.mxu0 0
    %925 = vmatprep.subr.bf16.mxu0 0
    %926 = vmatpush1.bf16.msra.mxu0 0
    %927 = vmatprep.subr.bf16.mxu0 0
    %928 = vmatpush1.bf16.msra.mxu0 0
    %929 = vmatprep.subr.bf16.mxu0 0
    %930 = vmatpush1.bf16.msra.mxu0 0
    %931 = vmatprep.mubr.bf16.mxu0 0
    %932 = vmatmul.mubr.bf16.gmra.mrb[0].mxu0 %v897
    %v933 = vpop.f32.mrb[0].mxu0
    %v934 = vadd.f32 0.0, %v933
    %v935 = vpop.f32.mrb[0].mxu0
    %v936 = vpop.f32.mrb[0].mxu0
    %v937 = vpop.f32.mrb[0].mxu0
    %938 = vdwg.mxu0
    %v939 = vadd.f32 %v887, %v934
    %v940 = vtanh.pop %v939
    %v941 = vmul.f32 %v940, 0.5
    %v942 = vadd.f32 %v941, 0.5
    %v943 = vmul.f32 %v942, %v770
    %945 = vrot.lane.b32.xlu0 %v940, 96
    %v946 = vpop.permute.xlu0 %945
    %v948 = vmul.f32 %v942, %v946
    %950 = vrot.lane.b32.xlu0 %v948, 96
    %v951 = vpop.permute.xlu0 %950
    %v953 = vadd.f32 %v943, %v951
    %v954 = vtanh.pop %v953
    %956 = vrot.lane.b32.xlu0 %v954, 96
    %v957 = vpop.permute.xlu0 %956
    %v959 = vmul.f32 %v942, %v957
    %960 = vmatprep.subr.bf16.mxu0 0
    %961 = vmatpush1.bf16.msra.mxu0 %v200
    %962 = vmatprep.subr.bf16.mxu0 0
    %963 = vmatpush1.bf16.msra.mxu0 %v201
    %964 = vmatprep.subr.bf16.mxu0 0
    %965 = vmatpush1.bf16.msra.mxu0 0
    %966 = vmatprep.subr.bf16.mxu0 0
    %967 = vmatpush1.bf16.msra.mxu0 0
    %968 = vmatprep.subr.bf16.mxu0 0
    %969 = vmatpush1.bf16.msra.mxu0 0
    %970 = vmatprep.subr.bf16.mxu0 0
    %971 = vmatpush1.bf16.msra.mxu0 0
    %972 = vmatprep.subr.bf16.mxu0 0
    %973 = vmatpush1.bf16.msra.mxu0 0
    %974 = vmatprep.subr.bf16.mxu0 0
    %975 = vmatpush1.bf16.msra.mxu0 0
    %976 = vmatprep.subr.bf16.mxu0 0
    %977 = vmatpush1.bf16.msra.mxu0 0
    %978 = vmatprep.subr.bf16.mxu0 0
    %979 = vmatpush1.bf16.msra.mxu0 0
    %980 = vmatprep.subr.bf16.mxu0 0
    %981 = vmatpush1.bf16.msra.mxu0 0
    %982 = vmatprep.subr.bf16.mxu0 0
    %983 = vmatpush1.bf16.msra.mxu0 0
    %984 = vmatprep.subr.bf16.mxu0 0
    %985 = vmatpush1.bf16.msra.mxu0 0
    %986 = vmatprep.subr.bf16.mxu0 0
    %987 = vmatpush1.bf16.msra.mxu0 0
    %988 = vmatprep.subr.bf16.mxu0 0
    %989 = vmatpush1.bf16.msra.mxu0 0
    %990 = vmatprep.subr.bf16.mxu0 0
    %991 = vmatpush1.bf16.msra.mxu0 0
    %992 = vmatprep.mubr.bf16.mxu0 0
    %993 = vmatmul.mubr.bf16.gmra.mrb[0].mxu0 %v850
    %v994 = vpop.f32.mrb[0].mxu0
    %v995 = vadd.f32 0.0, %v994
    %v996 = vpop.f32.mrb[0].mxu0
    %v997 = vpop.f32.mrb[0].mxu0
    %v998 = vpop.f32.mrb[0].mxu0
    %999 = vdwg.mxu0
    %v1000 = vadd.f32 %v182, %v995
    %v1001 = vtanh.pop %v1000
    %v1002 = vmul.f32 %v1001, 0.5
    %v1003 = vadd.f32 %v1002, 0.5
    %v1005 = vrot.slane %v837, 6
    %v1007 = vmul.f32 %v1003, %v1005
    %1009 = vrot.lane.b32.xlu0 %v1001, 96
    %v1010 = vpop.permute.xlu0 %1009
    %v1012 = vmul.f32 %v1003, %v1010
    %1014 = vrot.lane.b32.xlu0 %v1012, 96
    %v1015 = vpop.permute.xlu0 %1014
    %v1017 = vadd.f32 %v1007, %v1015
    %v1018 = vtanh.pop %v1017
    %1020 = vrot.lane.b32.xlu0 %v1018, 96
    %v1021 = vpop.permute.xlu0 %1020
    %v1023 = vmul.f32 %v1003, %v1021
    %v1024 = vpack.c.bf16 %v1023, %v1023
    %1026 = vrot.lane.b32.xlu0 %v1024, 32
    %v1027 = vpop.permute.xlu0 %1026
    %v1029 = vsel %vm204, %v1027, 0
    %1031 = vmatprep.subr.bf16.mxu0 0
    %1032 = vmatpush1.bf16.msra.mxu0 %v287
    %1033 = vmatprep.subr.bf16.mxu0 0
    %1034 = vmatpush1.bf16.msra.mxu0 %v288
    %1035 = vmatprep.subr.bf16.mxu0 0
    %1036 = vmatpush1.bf16.msra.mxu0 0
    %1037 = vmatprep.subr.bf16.mxu0 0
    %1038 = vmatpush1.bf16.msra.mxu0 0
    %1039 = vmatprep.subr.bf16.mxu0 0
    %1040 = vmatpush1.bf16.msra.mxu0 0
    %1041 = vmatprep.subr.bf16.mxu0 0
    %1042 = vmatpush1.bf16.msra.mxu0 0
    %1043 = vmatprep.subr.bf16.mxu0 0
    %1044 = vmatpush1.bf16.msra.mxu0 0
    %1045 = vmatprep.subr.bf16.mxu0 0
    %1046 = vmatpush1.bf16.msra.mxu0 0
    %1047 = vmatprep.subr.bf16.mxu0 0
    %1048 = vmatpush1.bf16.msra.mxu0 0
    %1049 = vmatprep.subr.bf16.mxu0 0
    %1050 = vmatpush1.bf16.msra.mxu0 0
    %1051 = vmatprep.subr.bf16.mxu0 0
    %1052 = vmatpush1.bf16.msra.mxu0 0
    %1053 = vmatprep.subr.bf16.mxu0 0
    %1054 = vmatpush1.bf16.msra.mxu0 0
    %1055 = vmatprep.subr.bf16.mxu0 0
    %1056 = vmatpush1.bf16.msra.mxu0 0
    %1057 = vmatprep.subr.bf16.mxu0 0
    %1058 = vmatpush1.bf16.msra.mxu0 0
    %1059 = vmatprep.subr.bf16.mxu0 0
    %1060 = vmatpush1.bf16.msra.mxu0 0
    %1061 = vmatprep.subr.bf16.mxu0 0
    %1062 = vmatpush1.bf16.msra.mxu0 0
    %1063 = vmatprep.mubr.bf16.mxu0 0
    %1064 = vmatmul.mubr.bf16.gmra.mrb[0].mxu0 %v1029
    %v1065 = vpop.f32.mrb[0].mxu0
    %v1066 = vadd.f32 %v274, %v1065
    %v1067 = vpop.f32.mrb[0].mxu0
    %v1068 = vpop.f32.mrb[0].mxu0
    %v1069 = vpop.f32.mrb[0].mxu0
    %1070 = vdwg.mxu0
    %v1071 = vpack.c.bf16 %v959, %v959
    %1073 = vrot.lane.b32.xlu0 %v1071, 32
    %v1074 = vpop.permute.xlu0 %1073
    %v1076 = vsel %vm204, %v1074, 0
    %1078 = vmatprep.subr.bf16.mxu0 0
    %1079 = vmatpush1.bf16.msra.mxu0 %v343
    %1080 = vmatprep.subr.bf16.mxu0 0
    %1081 = vmatpush1.bf16.msra.mxu0 %v344
    %1082 = vmatprep.subr.bf16.mxu0 0
    %1083 = vmatpush1.bf16.msra.mxu0 0
    %1084 = vmatprep.subr.bf16.mxu0 0
    %1085 = vmatpush1.bf16.msra.mxu0 0
    %1086 = vmatprep.subr.bf16.mxu0 0
    %1087 = vmatpush1.bf16.msra.mxu0 0
    %1088 = vmatprep.subr.bf16.mxu0 0
    %1089 = vmatpush1.bf16.msra.mxu0 0
    %1090 = vmatprep.subr.bf16.mxu0 0
    %1091 = vmatpush1.bf16.msra.mxu0 0
    %1092 = vmatprep.subr.bf16.mxu0 0
    %1093 = vmatpush1.bf16.msra.mxu0 0
    %1094 = vmatprep.subr.bf16.mxu0 0
    %1095 = vmatpush1.bf16.msra.mxu0 0
    %1096 = vmatprep.subr.bf16.mxu0 0
    %1097 = vmatpush1.bf16.msra.mxu0 0
    %1098 = vmatprep.subr.bf16.mxu0 0
    %1099 = vmatpush1.bf16.msra.mxu0 0
    %1100 = vmatprep.subr.bf16.mxu0 0
    %1101 = vmatpush1.bf16.msra.mxu0 0
    %1102 = vmatprep.subr.bf16.mxu0 0
    %1103 = vmatpush1.bf16.msra.mxu0 0
    %1104 = vmatprep.subr.bf16.mxu0 0
    %1105 = vmatpush1.bf16.msra.mxu0 0
    %1106 = vmatprep.subr.bf16.mxu0 0
    %1107 = vmatpush1.bf16.msra.mxu0 0
    %1108 = vmatprep.subr.bf16.mxu0 0
    %1109 = vmatpush1.bf16.msra.mxu0 0
    %1110 = vmatprep.mubr.bf16.mxu0 0
    %1111 = vmatmul.mubr.bf16.gmra.mrb[0].mxu0 %v1076
    %v1112 = vpop.f32.mrb[0].mxu0
    %v1113 = vadd.f32 0.0, %v1112
    %v1114 = vpop.f32.mrb[0].mxu0
    %v1115 = vpop.f32.mrb[0].mxu0
    %v1116 = vpop.f32.mrb[0].mxu0
    %1117 = vdwg.mxu0
    %v1118 = vadd.f32 %v1066, %v1113
    %v1119 = vtanh.pop %v1118
    %v1120 = vmul.f32 %v1119, 0.5
    %v1121 = vadd.f32 %v1120, 0.5
    %v1122 = vmul.f32 %v1121, %v953
    %1124 = vrot.lane.b32.xlu0 %v1119, 96
    %v1125 = vpop.permute.xlu0 %1124
    %v1127 = vmul.f32 %v1121, %v1125
    %1129 = vrot.lane.b32.xlu0 %v1127, 96
    %v1130 = vpop.permute.xlu0 %1129
    %v1132 = vadd.f32 %v1122, %v1130
    %v1133 = vtanh.pop %v1132
    %1135 = vrot.lane.b32.xlu0 %v1133, 96
    %v1136 = vpop.permute.xlu0 %1135
    %v1138 = vmul.f32 %v1121, %v1136
    %1139 = vmatprep.subr.bf16.mxu0 0
    %1140 = vmatpush1.bf16.msra.mxu0 %v200
    %1141 = vmatprep.subr.bf16.mxu0 0
    %1142 = vmatpush1.bf16.msra.mxu0 %v201
    %1143 = vmatprep.subr.bf16.mxu0 0
    %1144 = vmatpush1.bf16.msra.mxu0 0
    %1145 = vmatprep.subr.bf16.mxu0 0
    %1146 = vmatpush1.bf16.msra.mxu0 0
    %1147 = vmatprep.subr.bf16.mxu0 0
    %1148 = vmatpush1.bf16.msra.mxu0 0
    %1149 = vmatprep.subr.bf16.mxu0 0
    %1150 = vmatpush1.bf16.msra.mxu0 0
    %1151 = vmatprep.subr.bf16.mxu0 0
    %1152 = vmatpush1.bf16.msra.mxu0 0
    %1153 = vmatprep.subr.bf16.mxu0 0
    %1154 = vmatpush1.bf16.msra.mxu0 0
    %1155 = vmatprep.subr.bf16.mxu0 0
    %1156 = vmatpush1.bf16.msra.mxu0 0
    %1157 = vmatprep.subr.bf16.mxu0 0
    %1158 = vmatpush1.bf16.msra.mxu0 0
    %1159 = vmatprep.subr.bf16.mxu0 0
    %1160 = vmatpush1.bf16.msra.mxu0 0
    %1161 = vmatprep.subr.bf16.mxu0 0
    %1162 = vmatpush1.bf16.msra.mxu0 0
    %1163 = vmatprep.subr.bf16.mxu0 0
    %1164 = vmatpush1.bf16.msra.mxu0 0
    %1165 = vmatprep.subr.bf16.mxu0 0
    %1166 = vmatpush1.bf16.msra.mxu0 0
    %1167 = vmatprep.subr.bf16.mxu0 0
    %1168 = vmatpush1.bf16.msra.mxu0 0
    %1169 = vmatprep.subr.bf16.mxu0 0
    %1170 = vmatpush1.bf16.msra.mxu0 0
    %1171 = vmatprep.mubr.bf16.mxu0 0
    %1172 = vmatmul.mubr.bf16.gmra.mrb[0].mxu0 %v1029
    %v1173 = vpop.f32.mrb[0].mxu0
    %v1174 = vadd.f32 0.0, %v1173
    %v1175 = vpop.f32.mrb[0].mxu0
    %v1176 = vpop.f32.mrb[0].mxu0
    %v1177 = vpop.f32.mrb[0].mxu0
    %1178 = vdwg.mxu0
    %v1180 = vrot.slane %v1174, 6
    %v1182 = vadd.f32 %v182, %v1180
    %v1183 = vtanh.pop %v1182
    %v1184 = vmul.f32 %v1183, 0.5
    %v1185 = vadd.f32 %v1184, 0.5
    %v1187 = vrot.slane %v1017, 6
    %v1189 = vmul.f32 %v1185, %v1187
    %1191 = vrot.lane.b32.xlu0 %v1183, 96
    %v1192 = vpop.permute.xlu0 %1191
    %v1194 = vmul.f32 %v1185, %v1192
    %1196 = vrot.lane.b32.xlu0 %v1194, 96
    %v1197 = vpop.permute.xlu0 %1196
    %v1199 = vadd.f32 %v1189, %v1197
    %v1200 = vtanh.pop %v1199
    %1202 = vrot.lane.b32.xlu0 %v1200, 96
    %v1203 = vpop.permute.xlu0 %1202
    %v1205 = vmul.f32 %v1185, %v1203
    %v1206 = vpack.c.bf16 %v1205, %v1205
    %v1208 = vrot.slane %v1206, 1
    %1209 = vrot.lane.b32.xlu0 %v1208, 32
    %v1210 = vpop.permute.xlu0 %1209
    %v1212 = vsel %vm204, %v1210, 0
    %1214 = vmatprep.subr.bf16.mxu0 0
    %1215 = vmatpush1.bf16.msra.mxu0 %v287
    %1216 = vmatprep.subr.bf16.mxu0 0
    %1217 = vmatpush1.bf16.msra.mxu0 %v288
    %1218 = vmatprep.subr.bf16.mxu0 0
    %1219 = vmatpush1.bf16.msra.mxu0 0
    %1220 = vmatprep.subr.bf16.mxu0 0
    %1221 = vmatpush1.bf16.msra.mxu0 0
    %1222 = vmatprep.subr.bf16.mxu0 0
    %1223 = vmatpush1.bf16.msra.mxu0 0
    %1224 = vmatprep.subr.bf16.mxu0 0
    %1225 = vmatpush1.bf16.msra.mxu0 0
    %1226 = vmatprep.subr.bf16.mxu0 0
    %1227 = vmatpush1.bf16.msra.mxu0 0
    %1228 = vmatprep.subr.bf16.mxu0 0
    %1229 = vmatpush1.bf16.msra.mxu0 0
    %1230 = vmatprep.subr.bf16.mxu0 0
    %1231 = vmatpush1.bf16.msra.mxu0 0
    %1232 = vmatprep.subr.bf16.mxu0 0
    %1233 = vmatpush1.bf16.msra.mxu0 0
    %1234 = vmatprep.subr.bf16.mxu0 0
    %1235 = vmatpush1.bf16.msra.mxu0 0
    %1236 = vmatprep.subr.bf16.mxu0 0
    %1237 = vmatpush1.bf16.msra.mxu0 0
    %1238 = vmatprep.subr.bf16.mxu0 0
    %1239 = vmatpush1.bf16.msra.mxu0 0
    %1240 = vmatprep.subr.bf16.mxu0 0
    %1241 = vmatpush1.bf16.msra.mxu0 0
    %1242 = vmatprep.subr.bf16.mxu0 0
    %1243 = vmatpush1.bf16.msra.mxu0 0
    %1244 = vmatprep.subr.bf16.mxu0 0
    %1245 = vmatpush1.bf16.msra.mxu0 0
    %1246 = vmatprep.mubr.bf16.mxu0 0
    %1247 = vmatmul.mubr.bf16.gmra.mrb[0].mxu0 %v1212
    %v1248 = vpop.f32.mrb[0].mxu0
    %v1249 = vadd.f32 %v274, %v1248
    %v1250 = vpop.f32.mrb[0].mxu0
    %v1251 = vpop.f32.mrb[0].mxu0
    %v1252 = vpop.f32.mrb[0].mxu0
    %1253 = vdwg.mxu0
    %v1254 = vpack.c.bf16 %v1138, %v1138
    %1256 = vrot.lane.b32.xlu0 %v1254, 32
    %v1257 = vpop.permute.xlu0 %1256
    %v1259 = vsel %vm204, %v1257, 0
    %1261 = vmatprep.subr.bf16.mxu0 0
    %1262 = vmatpush1.bf16.msra.mxu0 %v343
    %1263 = vmatprep.subr.bf16.mxu0 0
    %1264 = vmatpush1.bf16.msra.mxu0 %v344
    %1265 = vmatprep.subr.bf16.mxu0 0
    %1266 = vmatpush1.bf16.msra.mxu0 0
    %1267 = vmatprep.subr.bf16.mxu0 0
    %1268 = vmatpush1.bf16.msra.mxu0 0
    %1269 = vmatprep.subr.bf16.mxu0 0
    %1270 = vmatpush1.bf16.msra.mxu0 0
    %1271 = vmatprep.subr.bf16.mxu0 0
    %1272 = vmatpush1.bf16.msra.mxu0 0
    %1273 = vmatprep.subr.bf16.mxu0 0
    %1274 = vmatpush1.bf16.msra.mxu0 0
    %1275 = vmatprep.subr.bf16.mxu0 0
    %1276 = vmatpush1.bf16.msra.mxu0 0
    %1277 = vmatprep.subr.bf16.mxu0 0
    %1278 = vmatpush1.bf16.msra.mxu0 0
    %1279 = vmatprep.subr.bf16.mxu0 0
    %1280 = vmatpush1.bf16.msra.mxu0 0
    %1281 = vmatprep.subr.bf16.mxu0 0
    %1282 = vmatpush1.bf16.msra.mxu0 0
    %1283 = vmatprep.subr.bf16.mxu0 0
    %1284 = vmatpush1.bf16.msra.mxu0 0
    %1285 = vmatprep.subr.bf16.mxu0 0
    %1286 = vmatpush1.bf16.msra.mxu0 0
    %1287 = vmatprep.subr.bf16.mxu0 0
    %1288 = vmatpush1.bf16.msra.mxu0 0
    %1289 = vmatprep.subr.bf16.mxu0 0
    %1290 = vmatpush1.bf16.msra.mxu0 0
    %1291 = vmatprep.subr.bf16.mxu0 0
    %1292 = vmatpush1.bf16.msra.mxu0 0
    %1293 = vmatprep.mubr.bf16.mxu0 0
    %1294 = vmatmul.mubr.bf16.gmra.mrb[0].mxu0 %v1259
    %v1295 = vpop.f32.mrb[0].mxu0
    %v1296 = vadd.f32 0.0, %v1295
    %v1297 = vpop.f32.mrb[0].mxu0
    %v1298 = vpop.f32.mrb[0].mxu0
    %v1299 = vpop.f32.mrb[0].mxu0
    %1300 = vdwg.mxu0
    %v1301 = vadd.f32 %v1249, %v1296
    %v1302 = vtanh.pop %v1301
    %v1303 = vmul.f32 %v1302, 0.5
    %v1304 = vadd.f32 %v1303, 0.5
    %v1305 = vmul.f32 %v1304, %v1132
    %1307 = vrot.lane.b32.xlu0 %v1302, 96
    %v1308 = vpop.permute.xlu0 %1307
    %v1310 = vmul.f32 %v1304, %v1308
    %1312 = vrot.lane.b32.xlu0 %v1310, 96
    %v1313 = vpop.permute.xlu0 %1312
    %v1315 = vadd.f32 %v1305, %v1313
    %v1316 = vtanh.pop %v1315
    %1318 = vrot.lane.b32.xlu0 %v1316, 96
    %v1319 = vpop.permute.xlu0 %1318
    %v1321 = vmul.f32 %v1304, %v1319
    %1322 = vmatprep.subr.bf16.mxu0 0
    %1323 = vmatpush1.bf16.msra.mxu0 %v200
    %1324 = vmatprep.subr.bf16.mxu0 0
    %1325 = vmatpush1.bf16.msra.mxu0 %v201
    %1326 = vmatprep.subr.bf16.mxu0 0
    %1327 = vmatpush1.bf16.msra.mxu0 0
    %1328 = vmatprep.subr.bf16.mxu0 0
    %1329 = vmatpush1.bf16.msra.mxu0 0
    %1330 = vmatprep.subr.bf16.mxu0 0
    %1331 = vmatpush1.bf16.msra.mxu0 0
    %1332 = vmatprep.subr.bf16.mxu0 0
    %1333 = vmatpush1.bf16.msra.mxu0 0
    %1334 = vmatprep.subr.bf16.mxu0 0
    %1335 = vmatpush1.bf16.msra.mxu0 0
    %1336 = vmatprep.subr.bf16.mxu0 0
    %1337 = vmatpush1.bf16.msra.mxu0 0
    %1338 = vmatprep.subr.bf16.mxu0 0
    %1339 = vmatpush1.bf16.msra.mxu0 0
    %1340 = vmatprep.subr.bf16.mxu0 0
    %1341 = vmatpush1.bf16.msra.mxu0 0
    %1342 = vmatprep.subr.bf16.mxu0 0
    %1343 = vmatpush1.bf16.msra.mxu0 0
    %1344 = vmatprep.subr.bf16.mxu0 0
    %1345 = vmatpush1.bf16.msra.mxu0 0
    %1346 = vmatprep.subr.bf16.mxu0 0
    %1347 = vmatpush1.bf16.msra.mxu0 0
    %1348 = vmatprep.subr.bf16.mxu0 0
    %1349 = vmatpush1.bf16.msra.mxu0 0
    %1350 = vmatprep.subr.bf16.mxu0 0
    %1351 = vmatpush1.bf16.msra.mxu0 0
    %1352 = vmatprep.subr.bf16.mxu0 0
    %1353 = vmatpush1.bf16.msra.mxu0 0
    %1354 = vmatprep.mubr.bf16.mxu0 0
    %1355 = vmatmul.mubr.bf16.gmra.mrb[0].mxu0 %v1212
    %v1356 = vpop.f32.mrb[0].mxu0
    %v1357 = vadd.f32 0.0, %v1356
    %v1358 = vpop.f32.mrb[0].mxu0
    %v1359 = vpop.f32.mrb[0].mxu0
    %v1360 = vpop.f32.mrb[0].mxu0
    %1361 = vdwg.mxu0
    %v1363 = vrot.slane %v1357, 4
    %v1365 = vadd.f32 %v182, %v1363
    %v1366 = vtanh.pop %v1365
    %v1367 = vmul.f32 %v1366, 0.5
    %v1368 = vadd.f32 %v1367, 0.5
    %v1370 = vrot.slane %v1199, 6
    %v1372 = vmul.f32 %v1368, %v1370
    %1374 = vrot.lane.b32.xlu0 %v1366, 96
    %v1375 = vpop.permute.xlu0 %1374
    %v1377 = vmul.f32 %v1368, %v1375
    %1379 = vrot.lane.b32.xlu0 %v1377, 96
    %v1380 = vpop.permute.xlu0 %1379
    %v1382 = vadd.f32 %v1372, %v1380
    %v1383 = vtanh.pop %v1382
    %1385 = vrot.lane.b32.xlu0 %v1383, 96
    %v1386 = vpop.permute.xlu0 %1385
    %v1388 = vmul.f32 %v1368, %v1386
    %v1389 = vpack.c.bf16 %v1388, %v1388
    %v1391 = vrot.slane %v1389, 2
    %1392 = vrot.lane.b32.xlu0 %v1391, 32
    %v1393 = vpop.permute.xlu0 %1392
    %v1395 = vsel %vm204, %v1393, 0
    %1397 = vmatprep.subr.bf16.mxu0 0
    %1398 = vmatpush1.bf16.msra.mxu0 %v287
    %1399 = vmatprep.subr.bf16.mxu0 0
    %1400 = vmatpush1.bf16.msra.mxu0 %v288
    %1401 = vmatprep.subr.bf16.mxu0 0
    %1402 = vmatpush1.bf16.msra.mxu0 0
    %1403 = vmatprep.subr.bf16.mxu0 0
    %1404 = vmatpush1.bf16.msra.mxu0 0
    %1405 = vmatprep.subr.bf16.mxu0 0
    %1406 = vmatpush1.bf16.msra.mxu0 0
    %1407 = vmatprep.subr.bf16.mxu0 0
    %1408 = vmatpush1.bf16.msra.mxu0 0
    %1409 = vmatprep.subr.bf16.mxu0 0
    %1410 = vmatpush1.bf16.msra.mxu0 0
    %1411 = vmatprep.subr.bf16.mxu0 0
    %1412 = vmatpush1.bf16.msra.mxu0 0
    %1413 = vmatprep.subr.bf16.mxu0 0
    %1414 = vmatpush1.bf16.msra.mxu0 0
    %1415 = vmatprep.subr.bf16.mxu0 0
    %1416 = vmatpush1.bf16.msra.mxu0 0
    %1417 = vmatprep.subr.bf16.mxu0 0
    %1418 = vmatpush1.bf16.msra.mxu0 0
    %1419 = vmatprep.subr.bf16.mxu0 0
    %1420 = vmatpush1.bf16.msra.mxu0 0
    %1421 = vmatprep.subr.bf16.mxu0 0
    %1422 = vmatpush1.bf16.msra.mxu0 0
    %1423 = vmatprep.subr.bf16.mxu0 0
    %1424 = vmatpush1.bf16.msra.mxu0 0
    %1425 = vmatprep.subr.bf16.mxu0 0
    %1426 = vmatpush1.bf16.msra.mxu0 0
    %1427 = vmatprep.subr.bf16.mxu0 0
    %1428 = vmatpush1.bf16.msra.mxu0 0
    %1429 = vmatprep.mubr.bf16.mxu0 0
    %1430 = vmatmul.mubr.bf16.gmra.mrb[0].mxu0 %v1395
    %v1431 = vpop.f32.mrb[0].mxu0
    %v1432 = vadd.f32 %v274, %v1431
    %v1433 = vpop.f32.mrb[0].mxu0
    %v1434 = vpop.f32.mrb[0].mxu0
    %v1435 = vpop.f32.mrb[0].mxu0
    %1436 = vdwg.mxu0
    %v1437 = vpack.c.bf16 %v1321, %v1321
    %1439 = vrot.lane.b32.xlu0 %v1437, 32
    %v1440 = vpop.permute.xlu0 %1439
    %v1442 = vsel %vm204, %v1440, 0
    %1444 = vmatprep.subr.bf16.mxu0 0
    %1445 = vmatpush1.bf16.msra.mxu0 %v343
    %1446 = vmatprep.subr.bf16.mxu0 0
    %1447 = vmatpush1.bf16.msra.mxu0 %v344
    %1448 = vmatprep.subr.bf16.mxu0 0
    %1449 = vmatpush1.bf16.msra.mxu0 0
    %1450 = vmatprep.subr.bf16.mxu0 0
    %1451 = vmatpush1.bf16.msra.mxu0 0
    %1452 = vmatprep.subr.bf16.mxu0 0
    %1453 = vmatpush1.bf16.msra.mxu0 0
    %1454 = vmatprep.subr.bf16.mxu0 0
    %1455 = vmatpush1.bf16.msra.mxu0 0
    %1456 = vmatprep.subr.bf16.mxu0 0
    %1457 = vmatpush1.bf16.msra.mxu0 0
    %1458 = vmatprep.subr.bf16.mxu0 0
    %1459 = vmatpush1.bf16.msra.mxu0 0
    %1460 = vmatprep.subr.bf16.mxu0 0
    %1461 = vmatpush1.bf16.msra.mxu0 0
    %1462 = vmatprep.subr.bf16.mxu0 0
    %1463 = vmatpush1.bf16.msra.mxu0 0
    %1464 = vmatprep.subr.bf16.mxu0 0
    %1465 = vmatpush1.bf16.msra.mxu0 0
    %1466 = vmatprep.subr.bf16.mxu0 0
    %1467 = vmatpush1.bf16.msra.mxu0 0
    %1468 = vmatprep.subr.bf16.mxu0 0
    %1469 = vmatpush1.bf16.msra.mxu0 0
    %1470 = vmatprep.subr.bf16.mxu0 0
    %1471 = vmatpush1.bf16.msra.mxu0 0
    %1472 = vmatprep.subr.bf16.mxu0 0
    %1473 = vmatpush1.bf16.msra.mxu0 0
    %1474 = vmatprep.subr.bf16.mxu0 0
    %1475 = vmatpush1.bf16.msra.mxu0 0
    %1476 = vmatprep.mubr.bf16.mxu0 0
    %1477 = vmatmul.mubr.bf16.gmra.mrb[0].mxu0 %v1442
    %v1478 = vpop.f32.mrb[0].mxu0
    %v1479 = vadd.f32 0.0, %v1478
    %v1480 = vpop.f32.mrb[0].mxu0
    %v1481 = vpop.f32.mrb[0].mxu0
    %v1482 = vpop.f32.mrb[0].mxu0
    %1483 = vdwg.mxu0
    %v1484 = vadd.f32 %v1432, %v1479
    %v1485 = vtanh.pop %v1484
    %v1486 = vmul.f32 %v1485, 0.5
    %v1487 = vadd.f32 %v1486, 0.5
    %v1488 = vmul.f32 %v1487, %v1315
    %1490 = vrot.lane.b32.xlu0 %v1485, 96
    %v1491 = vpop.permute.xlu0 %1490
    %v1493 = vmul.f32 %v1487, %v1491
    %1495 = vrot.lane.b32.xlu0 %v1493, 96
    %v1496 = vpop.permute.xlu0 %1495
    %v1498 = vadd.f32 %v1488, %v1496
    %v1499 = vtanh.pop %v1498
    %1501 = vrot.lane.b32.xlu0 %v1499, 96
    %v1502 = vpop.permute.xlu0 %1501
    %v1504 = vmul.f32 %v1487, %v1502
    %1505 = vmatprep.subr.bf16.mxu0 0
    %1506 = vmatpush1.bf16.msra.mxu0 %v200
    %1507 = vmatprep.subr.bf16.mxu0 0
    %1508 = vmatpush1.bf16.msra.mxu0 %v201
    %1509 = vmatprep.subr.bf16.mxu0 0
    %1510 = vmatpush1.bf16.msra.mxu0 0
    %1511 = vmatprep.subr.bf16.mxu0 0
    %1512 = vmatpush1.bf16.msra.mxu0 0
    %1513 = vmatprep.subr.bf16.mxu0 0
    %1514 = vmatpush1.bf16.msra.mxu0 0
    %1515 = vmatprep.subr.bf16.mxu0 0
    %1516 = vmatpush1.bf16.msra.mxu0 0
    %1517 = vmatprep.subr.bf16.mxu0 0
    %1518 = vmatpush1.bf16.msra.mxu0 0
    %1519 = vmatprep.subr.bf16.mxu0 0
    %1520 = vmatpush1.bf16.msra.mxu0 0
    %1521 = vmatprep.subr.bf16.mxu0 0
    %1522 = vmatpush1.bf16.msra.mxu0 0
    %1523 = vmatprep.subr.bf16.mxu0 0
    %1524 = vmatpush1.bf16.msra.mxu0 0
    %1525 = vmatprep.subr.bf16.mxu0 0
    %1526 = vmatpush1.bf16.msra.mxu0 0
    %1527 = vmatprep.subr.bf16.mxu0 0
    %1528 = vmatpush1.bf16.msra.mxu0 0
    %1529 = vmatprep.subr.bf16.mxu0 0
    %1530 = vmatpush1.bf16.msra.mxu0 0
    %1531 = vmatprep.subr.bf16.mxu0 0
    %1532 = vmatpush1.bf16.msra.mxu0 0
    %1533 = vmatprep.subr.bf16.mxu0 0
    %1534 = vmatpush1.bf16.msra.mxu0 0
    %1535 = vmatprep.subr.bf16.mxu0 0
    %1536 = vmatpush1.bf16.msra.mxu0 0
    %1537 = vmatprep.mubr.bf16.mxu0 0
    %1538 = vmatmul.mubr.bf16.gmra.mrb[0].mxu0 %v1395
    %v1539 = vpop.f32.mrb[0].mxu0
    %v1540 = vadd.f32 0.0, %v1539
    %v1541 = vpop.f32.mrb[0].mxu0
    %v1542 = vpop.f32.mrb[0].mxu0
    %v1543 = vpop.f32.mrb[0].mxu0
    %1544 = vdwg.mxu0
    %v1546 = vrot.slane %v1540, 2
    %v1548 = vadd.f32 %v182, %v1546
    %v1549 = vtanh.pop %v1548
    %v1550 = vmul.f32 %v1549, 0.5
    %v1551 = vadd.f32 %v1550, 0.5
    %v1553 = vrot.slane %v1382, 6
    %v1555 = vmul.f32 %v1551, %v1553
    %1557 = vrot.lane.b32.xlu0 %v1549, 96
    %v1558 = vpop.permute.xlu0 %1557
    %v1560 = vmul.f32 %v1551, %v1558
    %1562 = vrot.lane.b32.xlu0 %v1560, 96
    %v1563 = vpop.permute.xlu0 %1562
    %v1565 = vadd.f32 %v1555, %v1563
    %v1566 = vtanh.pop %v1565
    %1568 = vrot.lane.b32.xlu0 %v1566, 96
    %v1569 = vpop.permute.xlu0 %1568
    %v1571 = vmul.f32 %v1551, %v1569
    %v1572 = vpack.c.bf16 %v1571, %v1571
    %v1574 = vrot.slane %v1572, 3
    %1575 = vrot.lane.b32.xlu0 %v1574, 32
    %v1576 = vpop.permute.xlu0 %1575
    %v1578 = vsel %vm204, %v1576, 0
    %1580 = vmatprep.subr.bf16.mxu0 0
    %1581 = vmatpush1.bf16.msra.mxu0 %v287
    %1582 = vmatprep.subr.bf16.mxu0 0
    %1583 = vmatpush1.bf16.msra.mxu0 %v288
    %1584 = vmatprep.subr.bf16.mxu0 0
    %1585 = vmatpush1.bf16.msra.mxu0 0
    %1586 = vmatprep.subr.bf16.mxu0 0
    %1587 = vmatpush1.bf16.msra.mxu0 0
    %1588 = vmatprep.subr.bf16.mxu0 0
    %1589 = vmatpush1.bf16.msra.mxu0 0
    %1590 = vmatprep.subr.bf16.mxu0 0
    %1591 = vmatpush1.bf16.msra.mxu0 0
    %1592 = vmatprep.subr.bf16.mxu0 0
    %1593 = vmatpush1.bf16.msra.mxu0 0
    %1594 = vmatprep.subr.bf16.mxu0 0
    %1595 = vmatpush1.bf16.msra.mxu0 0
    %1596 = vmatprep.subr.bf16.mxu0 0
    %1597 = vmatpush1.bf16.msra.mxu0 0
    %1598 = vmatprep.subr.bf16.mxu0 0
    %1599 = vmatpush1.bf16.msra.mxu0 0
    %1600 = vmatprep.subr.bf16.mxu0 0
    %1601 = vmatpush1.bf16.msra.mxu0 0
    %1602 = vmatprep.subr.bf16.mxu0 0
    %1603 = vmatpush1.bf16.msra.mxu0 0
    %1604 = vmatprep.subr.bf16.mxu0 0
    %1605 = vmatpush1.bf16.msra.mxu0 0
    %1606 = vmatprep.subr.bf16.mxu0 0
    %1607 = vmatpush1.bf16.msra.mxu0 0
    %1608 = vmatprep.subr.bf16.mxu0 0
    %1609 = vmatpush1.bf16.msra.mxu0 0
    %1610 = vmatprep.subr.bf16.mxu0 0
    %1611 = vmatpush1.bf16.msra.mxu0 0
    %1612 = vmatprep.mubr.bf16.mxu0 0
    %1613 = vmatmul.mubr.bf16.gmra.mrb[0].mxu0 %v1578
    %v1614 = vpop.f32.mrb[0].mxu0
    %v1615 = vadd.f32 %v274, %v1614
    %v1616 = vpop.f32.mrb[0].mxu0
    %v1617 = vpop.f32.mrb[0].mxu0
    %v1618 = vpop.f32.mrb[0].mxu0
    %1619 = vdwg.mxu0
    %v1620 = vpack.c.bf16 %v1504, %v1504
    %1622 = vrot.lane.b32.xlu0 %v1620, 32
    %v1623 = vpop.permute.xlu0 %1622
    %v1625 = vsel %vm204, %v1623, 0
    %1627 = vmatprep.subr.bf16.mxu0 0
    %1628 = vmatpush1.bf16.msra.mxu0 %v343
    %1629 = vmatprep.subr.bf16.mxu0 0
    %1630 = vmatpush1.bf16.msra.mxu0 %v344
    %1631 = vmatprep.subr.bf16.mxu0 0
    %1632 = vmatpush1.bf16.msra.mxu0 0
    %1633 = vmatprep.subr.bf16.mxu0 0
    %1634 = vmatpush1.bf16.msra.mxu0 0
    %1635 = vmatprep.subr.bf16.mxu0 0
    %1636 = vmatpush1.bf16.msra.mxu0 0
    %1637 = vmatprep.subr.bf16.mxu0 0
    %1638 = vmatpush1.bf16.msra.mxu0 0
    %1639 = vmatprep.subr.bf16.mxu0 0
    %1640 = vmatpush1.bf16.msra.mxu0 0
    %1641 = vmatprep.subr.bf16.mxu0 0
    %1642 = vmatpush1.bf16.msra.mxu0 0
    %1643 = vmatprep.subr.bf16.mxu0 0
    %1644 = vmatpush1.bf16.msra.mxu0 0
    %1645 = vmatprep.subr.bf16.mxu0 0
    %1646 = vmatpush1.bf16.msra.mxu0 0
    %1647 = vmatprep.subr.bf16.mxu0 0
    %1648 = vmatpush1.bf16.msra.mxu0 0
    %1649 = vmatprep.subr.bf16.mxu0 0
    %1650 = vmatpush1.bf16.msra.mxu0 0
    %1651 = vmatprep.subr.bf16.mxu0 0
    %1652 = vmatpush1.bf16.msra.mxu0 0
    %1653 = vmatprep.subr.bf16.mxu0 0
    %1654 = vmatpush1.bf16.msra.mxu0 0
    %1655 = vmatprep.subr.bf16.mxu0 0
    %1656 = vmatpush1.bf16.msra.mxu0 0
    %1657 = vmatprep.subr.bf16.mxu0 0
    %1658 = vmatpush1.bf16.msra.mxu0 0
    %1659 = vmatprep.mubr.bf16.mxu0 0
    %1660 = vmatmul.mubr.bf16.gmra.mrb[0].mxu0 %v1625
    %v1661 = vpop.f32.mrb[0].mxu0
    %v1662 = vadd.f32 0.0, %v1661
    %v1663 = vpop.f32.mrb[0].mxu0
    %v1664 = vpop.f32.mrb[0].mxu0
    %v1665 = vpop.f32.mrb[0].mxu0
    %1666 = vdwg.mxu0
    %v1667 = vadd.f32 %v1615, %v1662
    %v1668 = vtanh.pop %v1667
    %v1669 = vmul.f32 %v1668, 0.5
    %v1670 = vadd.f32 %v1669, 0.5
    %v1671 = vmul.f32 %v1670, %v1498
    %1673 = vrot.lane.b32.xlu0 %v1668, 96
    %v1674 = vpop.permute.xlu0 %1673
    %v1676 = vmul.f32 %v1670, %v1674
    %1678 = vrot.lane.b32.xlu0 %v1676, 96
    %v1679 = vpop.permute.xlu0 %1678
    %v1681 = vadd.f32 %v1671, %v1679
    %v1682 = vtanh.pop %v1681
    %1684 = vrot.lane.b32.xlu0 %v1682, 96
    %v1685 = vpop.permute.xlu0 %1684
    %v1687 = vmul.f32 %v1670, %v1685
    %1689 = vrot.lane.b32.xlu0 %v1571, 32
    %v1690 = vpop.permute.xlu0 %1689
    %vm1692 = vcmask 261126
    %1693 = vst.msk [vmem:[#allocation11 - $0x6] sm:$0xc0] %vm1692, %v1690
    %1694 = vst.msk [vmem:[#allocation13 - $0x6] sm:$0xc0] %vm1692, %v1565
    %1696 = vrot.lane.b32.xlu0 %v1687, 32
    %v1697 = vpop.permute.xlu0 %1696
    %s1699 = scalar_lea.vmem [#allocation11], 2
    %vm1700 = vcmask 254976
    %1701 = vst.msk [vmem:[%s1699] sm:$0x3] %vm1700, %v1697
    %s1702 = scalar_lea.vmem [#allocation13], 2
    %1703 = vst.msk [vmem:[%s1702] sm:$0x3] %vm1700, %v1681
    %v1704 = vld [vmem:[%s9] sm:$0xff]
    %v1705 = vld [vmem:[%s9 + $0x8] sm:$0xff]
    %v1706 = vld [vmem:[%s9 + $0x10] sm:$0xff]
    %v1707 = vld [vmem:[%s9 + $0x18] sm:$0xff]
    %v1708 = vld [vmem:[%s10] sm:$0x1]
    %v1710 = vlaneseq
    %v1711 = vshrl.u32 %v1710, 7
    %v1712 = vsub.s32 0, %v1711
    %v1713 = vrot.slane %v1708, %v1712
    %v1715 = vsel %vm204, %v1697, 0
    %1717 = vmatprep.subr.mxu0 0.0
    %1718 = vmatpush1.msra.mxu0 %v1704
    %1719 = vmatprep.subr.mxu0 0.0
    %1720 = vmatpush1.msra.mxu0 %v1705
    %1721 = vmatprep.subr.mxu0 0.0
    %1722 = vmatpush1.msra.mxu0 %v1706
    %1723 = vmatprep.subr.mxu0 0.0
    %1724 = vmatpush1.msra.mxu0 %v1707
    %1725 = vmatprep.subr.mxu0 0.0
    %1726 = vmatpush1.msra.mxu0 0.0
    %1727 = vmatprep.subr.mxu0 0.0
    %1728 = vmatpush1.msra.mxu0 0.0
    %1729 = vmatprep.subr.mxu0 0.0
    %1730 = vmatpush1.msra.mxu0 0.0
    %1731 = vmatprep.subr.mxu0 0.0
    %1732 = vmatpush1.msra.mxu0 0.0
    %1733 = vmatprep.subr.mxu0 0.0
    %1734 = vmatpush1.msra.mxu0 0.0
    %1735 = vmatprep.subr.mxu0 0.0
    %1736 = vmatpush1.msra.mxu0 0.0
    %1737 = vmatprep.subr.mxu0 0.0
    %1738 = vmatpush1.msra.mxu0 0.0
    %1739 = vmatprep.subr.mxu0 0.0
    %1740 = vmatpush1.msra.mxu0 0.0
    %1741 = vmatprep.subr.mxu0 0.0
    %1742 = vmatpush1.msra.mxu0 0.0
    %1743 = vmatprep.subr.mxu0 0.0
    %1744 = vmatpush1.msra.mxu0 0.0
    %1745 = vmatprep.subr.mxu0 0.0
    %1746 = vmatpush1.msra.mxu0 0.0
    %1747 = vmatprep.subr.mxu0 0.0
    %1748 = vmatpush1.msra.mxu0 0.0
    %1749 = vmatprep.subr.mxu0 0.0
    %1750 = vmatpush1.msra.mxu0 0.0
    %1751 = vmatprep.subr.mxu0 0.0
    %1752 = vmatpush1.msra.mxu0 0.0
    %1753 = vmatprep.subr.mxu0 0.0
    %1754 = vmatpush1.msra.mxu0 0.0
    %1755 = vmatprep.subr.mxu0 0.0
    %1756 = vmatpush1.msra.mxu0 0.0
    %1757 = vmatprep.subr.mxu0 0.0
    %1758 = vmatpush1.msra.mxu0 0.0
    %1759 = vmatprep.subr.mxu0 0.0
    %1760 = vmatpush1.msra.mxu0 0.0
    %1761 = vmatprep.subr.mxu0 0.0
    %1762 = vmatpush1.msra.mxu0 0.0
    %1763 = vmatprep.subr.mxu0 0.0
    %1764 = vmatpush1.msra.mxu0 0.0
    %1765 = vmatprep.subr.mxu0 0.0
    %1766 = vmatpush1.msra.mxu0 0.0
    %1767 = vmatprep.subr.mxu0 0.0
    %1768 = vmatpush1.msra.mxu0 0.0
    %1769 = vmatprep.subr.mxu0 0.0
    %1770 = vmatpush1.msra.mxu0 0.0
    %1771 = vmatprep.subr.mxu0 0.0
    %1772 = vmatpush1.msra.mxu0 0.0
    %1773 = vmatprep.subr.mxu0 0.0
    %1774 = vmatpush1.msra.mxu0 0.0
    %1775 = vmatprep.subr.mxu0 0.0
    %1776 = vmatpush1.msra.mxu0 0.0
    %1777 = vmatprep.subr.mxu0 0.0
    %1778 = vmatpush1.msra.mxu0 0.0
    %1779 = vmatprep.subr.mxu0 0.0
    %1780 = vmatpush1.msra.mxu0 0.0
    %1781 = vmatprep.mubr.f32.mxu0 0.0
    %1782 = vmatmul.mubr.f32.gmra.mrb[0].mxu0 %v1715
    %v1783 = vpop.f32.mrb[0].mxu0
    %v1784 = vadd.f32 %v1713, %v1783
    %v1785 = vpop.f32.mrb[0].mxu0
    %1786 = vdwg.mxu0
    %v1787 = vld [vmem:[%s11] sm:$0xff]
    %v1788 = vld [vmem:[%s11 + $0x8] sm:$0xff]
    %v1789 = vld [vmem:[%s11 + $0x10] sm:$0xff]
    %v1790 = vld [vmem:[%s11 + $0x18] sm:$0xff]
    %v1791 = vld [vmem:[%s12] sm:$0x1]
    %v1793 = vlaneseq
    %v1794 = vshrl.u32 %v1793, 7
    %v1795 = vsub.s32 0, %v1794
    %v1796 = vrot.slane %v1791, %v1795
    %v1799 = vsel %vm204, %v1784, 0
    %1801 = vmatprep.subr.mxu0 0.0
    %1802 = vmatpush1.msra.mxu0 %v1787
    %1803 = vmatprep.subr.mxu0 0.0
    %1804 = vmatpush1.msra.mxu0 %v1788
    %1805 = vmatprep.subr.mxu0 0.0
    %1806 = vmatpush1.msra.mxu0 %v1789
    %1807 = vmatprep.subr.mxu0 0.0
    %1808 = vmatpush1.msra.mxu0 %v1790
    %1809 = vmatprep.subr.mxu0 0.0
    %1810 = vmatpush1.msra.mxu0 0.0
    %1811 = vmatprep.subr.mxu0 0.0
    %1812 = vmatpush1.msra.mxu0 0.0
    %1813 = vmatprep.subr.mxu0 0.0
    %1814 = vmatpush1.msra.mxu0 0.0
    %1815 = vmatprep.subr.mxu0 0.0
    %1816 = vmatpush1.msra.mxu0 0.0
    %1817 = vmatprep.subr.mxu0 0.0
    %1818 = vmatpush1.msra.mxu0 0.0
    %1819 = vmatprep.subr.mxu0 0.0
    %1820 = vmatpush1.msra.mxu0 0.0
    %1821 = vmatprep.subr.mxu0 0.0
    %1822 = vmatpush1.msra.mxu0 0.0
    %1823 = vmatprep.subr.mxu0 0.0
    %1824 = vmatpush1.msra.mxu0 0.0
    %1825 = vmatprep.subr.mxu0 0.0
    %1826 = vmatpush1.msra.mxu0 0.0
    %1827 = vmatprep.subr.mxu0 0.0
    %1828 = vmatpush1.msra.mxu0 0.0
    %1829 = vmatprep.subr.mxu0 0.0
    %1830 = vmatpush1.msra.mxu0 0.0
    %1831 = vmatprep.subr.mxu0 0.0
    %1832 = vmatpush1.msra.mxu0 0.0
    %1833 = vmatprep.subr.mxu0 0.0
    %1834 = vmatpush1.msra.mxu0 0.0
    %1835 = vmatprep.subr.mxu0 0.0
    %1836 = vmatpush1.msra.mxu0 0.0
    %1837 = vmatprep.subr.mxu0 0.0
    %1838 = vmatpush1.msra.mxu0 0.0
    %1839 = vmatprep.subr.mxu0 0.0
    %1840 = vmatpush1.msra.mxu0 0.0
    %1841 = vmatprep.subr.mxu0 0.0
    %1842 = vmatpush1.msra.mxu0 0.0
    %1843 = vmatprep.subr.mxu0 0.0
    %1844 = vmatpush1.msra.mxu0 0.0
    %1845 = vmatprep.subr.mxu0 0.0
    %1846 = vmatpush1.msra.mxu0 0.0
    %1847 = vmatprep.subr.mxu0 0.0
    %1848 = vmatpush1.msra.mxu0 0.0
    %1849 = vmatprep.subr.mxu0 0.0
    %1850 = vmatpush1.msra.mxu0 0.0
    %1851 = vmatprep.subr.mxu0 0.0
    %1852 = vmatpush1.msra.mxu0 0.0
    %1853 = vmatprep.subr.mxu0 0.0
    %1854 = vmatpush1.msra.mxu0 0.0
    %1855 = vmatprep.subr.mxu0 0.0
    %1856 = vmatpush1.msra.mxu0 0.0
    %1857 = vmatprep.subr.mxu0 0.0
    %1858 = vmatpush1.msra.mxu0 0.0
    %1859 = vmatprep.subr.mxu0 0.0
    %1860 = vmatpush1.msra.mxu0 0.0
    %1861 = vmatprep.subr.mxu0 0.0
    %1862 = vmatpush1.msra.mxu0 0.0
    %1863 = vmatprep.subr.mxu0 0.0
    %1864 = vmatpush1.msra.mxu0 0.0
    %1865 = vmatprep.mubr.f32.mxu0 0.0
    %1866 = vmatmul.mubr.f32.gmra.mrb[0].mxu0 %v1799
    %v1867 = vpop.f32.mrb[0].mxu0
    %v1868 = vadd.f32 %v1796, %v1867
    %v1869 = vpop.f32.mrb[0].mxu0
    %1870 = vdwg.mxu0
    %vm1871 = vcmask 25600
    %1872 = vst.msk [vmem:[#allocation10] sm:$0x3] %vm1871, %v1868
    // Predicated region
    $region70: #{tpu_custom_call.1} parent=1 // pred_check
      _
    $region71: #{tpu_custom_call.1} parent=1 // pred_check_branch
      %1874 = sbr.rel (0) target = $region73
    $region72: #{tpu_custom_call.1} parent=1 // pred_region
      %s1876 = ssub.s32 32, 32
      %1877 = vsyncadd [#allocation4], %s1876
      %s1879 = sshll.u32 [#allocation10], 4
      %s1880 = int_to_ptr.vmem [resolvable:$true] %s1879
      %1882 = dma.vmem_to_hbm [thread:$0]  %s1880, 32, %s13, [#allocation4]
    $region73: #{tpu_custom_call.1} parent=1 // pred_fallthru
      _
    // Predicated region
    $region74: #{tpu_custom_call.1} parent=1 // pred_check
      _
    $region75: #{tpu_custom_call.1} parent=1 // pred_check_branch
      %1884 = sbr.rel (0) target = $region77
    $region76: #{tpu_custom_call.1} parent=1 // pred_region
      %s1886 = ssub.s32 64, 64
      %1887 = vsyncadd [#allocation12], %s1886
      %s1888 = sshll.u32 [#allocation11], 4
      %s1889 = int_to_ptr.vmem [resolvable:$true] %s1888
      %1894 = dma.vmem_to_hbm [thread:$0]  %s1889, 64, %s14, [#allocation12], 32, 32, 2
    $region77: #{tpu_custom_call.1} parent=1 // pred_fallthru
      _
    // Predicated region
    $region78: #{tpu_custom_call.1} parent=1 // pred_check
      _
    $region79: #{tpu_custom_call.1} parent=1 // pred_check_branch
      %1896 = sbr.rel (0) target = $region81
    $region80: #{tpu_custom_call.1} parent=1 // pred_region
      %s1898 = ssub.s32 64, 64
      %1899 = vsyncadd [#allocation12], %s1898
      %s1900 = sshll.u32 [#allocation13], 4
      %s1901 = int_to_ptr.vmem [resolvable:$true] %s1900
      %1906 = dma.vmem_to_hbm [thread:$0]  %s1901, 64, %s15, [#allocation12], 32, 32, 2
    $region81: #{tpu_custom_call.1} parent=1 // pred_fallthru
      _
    // Predicated region
    $region82: #{tpu_custom_call.1} parent=1 // pred_check
      _
    $region83: #{tpu_custom_call.1} parent=1 // pred_check_branch
      %1908 = sbr.rel (0) target = $region85
    $region84: #{tpu_custom_call.1} parent=1 // pred_region
      %1909 = dma.done [#allocation4], 32
    $region85: #{tpu_custom_call.1} parent=1 // pred_fallthru
      _
    // Predicated region
    $region86: #{tpu_custom_call.1} parent=1 // pred_check
      _
    $region87: #{tpu_custom_call.1} parent=1 // pred_check_branch
      %1911 = sbr.rel (0) target = $region89
    $region88: #{tpu_custom_call.1} parent=1 // pred_region
      %1912 = dma.done [#allocation12], 64
    $region89: #{tpu_custom_call.1} parent=1 // pred_fallthru
      _
    // Predicated region
    $region90: #{tpu_custom_call.1} parent=1 // pred_check
      _
    $region91: #{tpu_custom_call.1} parent=1 // pred_check_branch
      %1914 = sbr.rel (0) target = $region93
    $region92: #{tpu_custom_call.1} parent=1 // pred_region
      %1915 = dma.done [#allocation12], 64
    $region93: #{tpu_custom_call.1} parent=1 // pred_fallthru
      _
    %1916 = vsyncpa [#allocation3], 1
    %1917 = vsyncpa [#allocation6], 1
    %1918 = vsyncpa [#allocation9], 1
    %1919 = vsyncpa [#allocation4], 1
    %1920 = vsyncpa [#allocation12], 1

</llo_original>
